<compile_context>
chip_gen: v7x
topology: tpu7x:2x2x1
jax: 0.10.0
libtpu: 0.0.40
codegen_flags: <defaults>
</compile_context>

<pallas_src>
import functools

import jax
import jax.numpy as jnp
from jax import lax
from jax.experimental import pallas as pl
from jax.experimental.pallas import tpu as pltpu


def _posmap_kernel(x_ref, pos_ref, mask_ref, bias_ref, o_ref, *, gamma, n, tile):
    """One grid step: `tile` windows of shape (N, C), all channel groups.

    x_ref   : (tile, N, C)       input windows, native layout & dtype
    pos_ref : (gamma*N, N)       stacked relative-position operator, x dtype (VMEM-resident)
    mask_ref: (gamma, N, C)      f32 pre-broadcast channel-group masks   (VMEM-resident)
    bias_ref: (N, C)             f32 pre-broadcast token_proj_n_bias     (VMEM-resident)
    o_ref   : (tile, N, C)       output windows
    """
    # Hoisted once per grid step (JAX does not CSE broadcasts/loads inside the loop).
    bias = bias_ref[...]                                   # (N, C) f32
    pos = pos_ref[...]                                     # (gamma*N, N)
    if gamma > 1:
        masks = [mask_ref[s] for s in range(gamma)]        # gamma x (N, C) f32

    def one_window(t, carry):
        xt = x_ref[t]                                      # (N, C) native dtype -> MXU RHS
        # Single stacked MXU matmul, f32 accumulation.
        res = jnp.dot(pos, xt, preferred_element_type=jnp.float32)   # (gamma*N, C) f32
        if gamma == 1:
            acc = res
        else:
            # Mask-on-output combine: out[m, c] = res[(c % gamma)*N + m, c].
            acc = res[0:n, :] * masks[0]
            for s in range(1, gamma):                      # gamma is a small static int
                acc = acc + res[s * n:(s + 1) * n, :] * masks[s]
        # Bias add + downcast once on the final f32 accumulator -> one lane-dense store.
        o_ref[t] = (acc + bias).astype(o_ref.dtype)
        return carry

    # Partial unroll: lets the scheduler overlap adjacent windows without blowing vregs.
    lax.fori_loop(0, tile, one_window, 0, unroll=min(8, tile))


def _vmem_limit_bytes():
    """Generation-aware VMEM limit (v5e/v6e: 128 MiB physical, v7x: 64 MiB per core)."""
    try:
        cap = int(pltpu.get_tpu_info().vmem_capacity_bytes)
    except Exception:  # pragma: no cover - conservative fallback (v7x-sized)
        cap = 64 * 1024 * 1024
    limit = min(cap - 16 * 1024 * 1024, (cap * 3) // 4)
    return max(limit, 32 * 1024 * 1024)


def _choose_tile(bw, per_window_bytes, block_budget_bytes, min_grid_steps=8):
    """Pick (tile, pad): how many (b, w) windows per grid step, and B*W padding.

    tile is sized so double-buffered (input + output) blocks stay within the budget,
    while keeping >= min_grid_steps grid steps (megacore sharding / pipelining) whenever
    each block can still hold >= ~1 MiB of x. Ragged B*W is padded instead of letting the
    tile degrade toward 1.
    """
    # Largest tile whose 2 x (in + out) blocks fit the budget.
    t_budget = max(1, block_budget_bytes // (4 * per_window_bytes))
    # Keep enough grid steps for the 2 TensorCores / pipelining, but never shrink a block
    # below ~1 MiB of x per step.
    min_tile = max(1, (1 << 20) // per_window_bytes)
    t_steps = max(min_tile, bw // min_grid_steps) if bw >= min_grid_steps else bw
    t = max(1, min(t_budget, t_steps, bw))
    # Prefer an exact grid (largest divisor of bw not far below t); otherwise pad.
    for cand in range(t, 0, -1):
        if bw % cand == 0:
            if 2 * cand >= t:
                return cand, 0
            break
    return t, (-bw) % t


def learned_pos_map_1d(x, rel_bias_table, token_proj_n_bias, *, gamma):
    """Pallas-TPU forward of LearnedPosMap1D (weight=None, mask=None path).

    x:                  (B, W, N, C) with C = V * gamma
    rel_bias_table:     (2*N - 1, gamma)   window_relative_position_bias_table
    token_proj_n_bias:  (1, N, 1)          per-row bias
    """
    # TODO(synk): optional `weight` additive term (per-window perturbation of the posmap)
    # and the unused `mask` argument of the PyTorch forward are not implemented.
    B, W, N, C = x.shape
    if C % gamma != 0:
        raise ValueError(f"C={C} must be divisible by gamma={gamma}")
    if rel_bias_table.shape != (2 * N - 1, gamma):
        raise ValueError("rel_bias_table must have shape (2*N-1, gamma)")
    # TODO(synk): if production C < 128, the (.., N, C) output stores are masked partial
    # vst's; a lane-dense re-blocking would need a different in-kernel operator layout.

    BW = B * W
    itemsize = jnp.dtype(x.dtype).itemsize
    per_window = N * C * itemsize

    vmem_limit = _vmem_limit_bytes()
    tile, pad = _choose_tile(BW, per_window, vmem_limit // 2)
    BWp = BW + pad
    grid = (BWp // tile,)

    # --- one-time prologue (tiny, outside the hot grid) -------------------------------
    # posmap[s, m, n] = rel_bias_table[(m - n) + N - 1, s]; stacked along M for one matmul.
    rel_idx = (jnp.arange(N)[:, None] - jnp.arange(N)[None, :]) + (N - 1)          # (N, N)
    posmap = jnp.transpose(rel_bias_table[rel_idx], (2, 0, 1))                     # (g,N,N)
    pos_stacked = posmap.reshape(gamma * N, N).astype(x.dtype)                     # (g*N,N)

    # channel-group masks, pre-broadcast to (gamma, N, C): mask[s,:,c] = 1 iff c%gamma==s
    masks = (jnp.arange(C)[None, :] % gamma == jnp.arange(gamma)[:, None])
    masks_b = jnp.broadcast_to(masks.astype(jnp.float32)[:, None, :], (gamma, N, C))

    # token bias pre-broadcast to the output block shape (hoisted out of all loops)
    bias_full = jnp.broadcast_to(
        token_proj_n_bias.reshape(N, 1).astype(jnp.float32), (N, C))

    # free reshape: merge leading dims, no data movement; pad only if B*W is ragged
    x2 = x.reshape(BW, N, C)
    if pad:
        x2 = jnp.pad(x2, ((0, pad), (0, 0), (0, 0)))

    kernel = functools.partial(_posmap_kernel, gamma=gamma, n=N, tile=tile)

    cost = pl.CostEstimate(
        flops=2 * BWp * gamma * N * N * C + 2 * BWp * gamma * N * C,
        transcendentals=0,
        bytes_accessed=(2 * BWp * N * C * itemsize
                        + pos_stacked.size * jnp.dtype(pos_stacked.dtype).itemsize
                        + masks_b.size * 4 + bias_full.size * 4),
    )

    out = pl.pallas_call(
        kernel,
        out_shape=jax.ShapeDtypeStruct((BWp, N, C), x.dtype),
        grid_spec=pltpu.PrefetchScalarGridSpec(
            num_scalar_prefetch=0,
            grid=grid,
            in_specs=[
                pl.BlockSpec((tile, N, C), lambda i: (i, 0, 0)),       # x: tiled over B*W
                pl.BlockSpec((gamma * N, N), lambda i: (0, 0)),        # posmap: resident
                pl.BlockSpec((gamma, N, C), lambda i: (0, 0, 0)),      # masks:  resident
                pl.BlockSpec((N, C), lambda i: (0, 0)),                # bias:   resident
            ],
            out_specs=pl.BlockSpec((tile, N, C), lambda i: (i, 0, 0)),
        ),
        compiler_params=pltpu.CompilerParams(
            dimension_semantics=("parallel",),       # shards across v7x's 2 TensorCores
            vmem_limit_bytes=vmem_limit,             # generation-aware
        ),
        cost_estimate=cost,
    )(x2, pos_stacked, masks_b, bias_full)

    if pad:
        out = out[:BW]
    return out.reshape(B, W, N, C)


def _reference(x, rel_bias_table, token_proj_n_bias, gamma):
    """Pure-JAX reference matching the PyTorch forward (weight=None, mask=None)."""
    B, W, N, C = x.shape
    V = C // gamma
    rel_idx = (jnp.arange(N)[:, None] - jnp.arange(N)[None, :]) + (N - 1)
    posmap = jnp.transpose(rel_bias_table[rel_idx], (2, 0, 1))      # (gamma, N, N)
    xg = x.reshape(B, W, N, V, gamma)
    out = jnp.einsum('smn,bwnvs->bwmvs', posmap, xg)
    out = out + token_proj_n_bias.reshape(1, 1, N, 1, 1)
    return out.reshape(B, W, N, C)


if __name__ == "__main__":
    key = jax.random.PRNGKey(0)
    kx, kt, kb = jax.random.split(key, 3)

    # Small shapes consistent with the module: win_size N=16, gamma=4 groups, V=8 -> C=32
    B, W, N, gamma, V = 2, 4, 16, 4, 8
    C = V * gamma

    x = jax.random.normal(kx, (B, W, N, C), dtype=jnp.float32)
    rel_bias_table = 0.02 * jax.random.normal(kt, (2 * N - 1, gamma), dtype=jnp.float32)
    token_proj_n_bias = 0.02 * jax.random.normal(kb, (1, N, 1), dtype=jnp.float32)

    out = learned_pos_map_1d(x, rel_bias_table, token_proj_n_bias, gamma=gamma)
    out = jax.block_until_ready(out)

    ref = _reference(x, rel_bias_table, token_proj_n_bias, gamma)
    max_err = float(jnp.max(jnp.abs(out - ref)))
    if max_err > 2e-3:
        raise AssertionError(f"Pallas kernel mismatch vs reference: max abs err = {max_err}")

    print("KERNEL_OK")
</pallas_src>

<mosaic_0001>
module attributes {stable_mosaic.version = 11 : i64} {
  func.func @_posmap_kernel(%arg0: i32, %arg1: memref<8x16x32xf32, #tpu.memory_space<vmem>>, %arg2: memref<64x16xf32, #tpu.memory_space<vmem>>, %arg3: memref<4x16x32xf32, #tpu.memory_space<vmem>>, %arg4: memref<16x32xf32, #tpu.memory_space<vmem>>, %arg5: memref<8x16x32xf32, #tpu.memory_space<vmem>>) attributes {dimension_semantics = [#tpu.dimension_semantics<parallel>], iteration_bounds = array<i64: 1>, scalar_prefetch = 0 : i64, scratch_operands = 0 : i64, tpu.core_type = #tpu.core_type<tc>, window_params = [{transform_indices = @transform_0, window_bounds = array<i64: 8, 16, 32>}, {pipeline_mode = #tpu.pipeline_mode<synchronous>, transform_indices = @transform_1, window_bounds = array<i64: 64, 16>}, {pipeline_mode = #tpu.pipeline_mode<synchronous>, transform_indices = @transform_2, window_bounds = array<i64: 4, 16, 32>}, {pipeline_mode = #tpu.pipeline_mode<synchronous>, transform_indices = @transform_3, window_bounds = array<i64: 16, 32>}, {transform_indices = @transform_4, window_bounds = array<i64: 8, 16, 32>}]} {
    %c0 = arith.constant 0 : index
    %c0_0 = arith.constant 0 : index
    %0 = vector.load %arg4[%c0, %c0_0] : memref<16x32xf32, #tpu.memory_space<vmem>>, vector<16x32xf32>
    %c0_1 = arith.constant 0 : index
    %c0_2 = arith.constant 0 : index
    %1 = vector.load %arg2[%c0_1, %c0_2] : memref<64x16xf32, #tpu.memory_space<vmem>>, vector<64x16xf32>
    %c0_3 = arith.constant 0 : index
    %c0_4 = arith.constant 0 : index
    %c0_5 = arith.constant 0 : index
    %2 = vector.load %arg3[%c0_3, %c0_4, %c0_5] : memref<4x16x32xf32, #tpu.memory_space<vmem>>, vector<1x16x32xf32>
    %3 = vector.shape_cast %2 : vector<1x16x32xf32> to vector<16x32xf32>
    %c1 = arith.constant 1 : index
    %c0_6 = arith.constant 0 : index
    %c0_7 = arith.constant 0 : index
    %4 = vector.load %arg3[%c1, %c0_6, %c0_7] : memref<4x16x32xf32, #tpu.memory_space<vmem>>, vector<1x16x32xf32>
    %5 = vector.shape_cast %4 : vector<1x16x32xf32> to vector<16x32xf32>
    %c2 = arith.constant 2 : index
    %c0_8 = arith.constant 0 : index
    %c0_9 = arith.constant 0 : index
    %6 = vector.load %arg3[%c2, %c0_8, %c0_9] : memref<4x16x32xf32, #tpu.memory_space<vmem>>, vector<1x16x32xf32>
    %7 = vector.shape_cast %6 : vector<1x16x32xf32> to vector<16x32xf32>
    %c3 = arith.constant 3 : index
    %c0_10 = arith.constant 0 : index
    %c0_11 = arith.constant 0 : index
    %8 = vector.load %arg3[%c3, %c0_10, %c0_11] : memref<4x16x32xf32, #tpu.memory_space<vmem>>, vector<1x16x32xf32>
    %9 = vector.shape_cast %8 : vector<1x16x32xf32> to vector<16x32xf32>
    %c0_i32 = arith.constant 0 : i32
    %10 = arith.index_cast %c0_i32 : i32 to index
    %c0_12 = arith.constant 0 : index
    %c0_13 = arith.constant 0 : index
    %11 = vector.load %arg1[%10, %c0_12, %c0_13] : memref<8x16x32xf32, #tpu.memory_space<vmem>>, vector<1x16x32xf32>
    %12 = vector.shape_cast %11 : vector<1x16x32xf32> to vector<16x32xf32>
    %cst = arith.constant dense<0.000000e+00> : vector<64x32xf32>
    %13 = tpu.matmul %1, %12, %cst {dimension_numbers = #tpu.dot_dimension_numbers<[1], [0], [0], [1], [0, 0, 1, 1], [], []>} : vector<64x16xf32>, vector<16x32xf32>, vector<64x32xf32> -> vector<64x32xf32>
    %14 = vector.extract_strided_slice %13 {offsets = [0, 0], sizes = [16, 32], strides = [1, 1]} : vector<64x32xf32> to vector<16x32xf32>
    %15 = arith.mulf %14, %3 : vector<16x32xf32>
    %16 = vector.extract_strided_slice %13 {offsets = [16, 0], sizes = [16, 32], strides = [1, 1]} : vector<64x32xf32> to vector<16x32xf32>
    %17 = arith.mulf %16, %5 : vector<16x32xf32>
    %18 = arith.addf %15, %17 : vector<16x32xf32>
    %19 = vector.extract_strided_slice %13 {offsets = [32, 0], sizes = [16, 32], strides = [1, 1]} : vector<64x32xf32> to vector<16x32xf32>
    %20 = arith.mulf %19, %7 : vector<16x32xf32>
    %21 = arith.addf %18, %20 : vector<16x32xf32>
    %22 = vector.extract_strided_slice %13 {offsets = [48, 0], sizes = [16, 32], strides = [1, 1]} : vector<64x32xf32> to vector<16x32xf32>
    %23 = arith.mulf %22, %9 : vector<16x32xf32>
    %24 = arith.addf %21, %23 : vector<16x32xf32>
    %25 = arith.addf %24, %0 : vector<16x32xf32>
    %26 = arith.index_cast %c0_i32 : i32 to index
    %c0_14 = arith.constant 0 : index
    %c0_15 = arith.constant 0 : index
    %27 = vector.load %arg5[%26, %c0_14, %c0_15] : memref<8x16x32xf32, #tpu.memory_space<vmem>>, vector<1x16x32xf32>
    %28 = vector.shape_cast %27 : vector<1x16x32xf32> to vector<16x32xf32>
    %29 = vector.shape_cast %25 : vector<16x32xf32> to vector<1x16x32xf32>
    tpu.vector_store %arg5[%26, %c0_14, %c0_15], %29 {strides = array<i32>} : memref<8x16x32xf32, #tpu.memory_space<vmem>>, vector<1x16x32xf32>,
    %c1_i32 = arith.constant 1 : i32
    %30 = arith.index_cast %c1_i32 : i32 to index
    %c0_16 = arith.constant 0 : index
    %c0_17 = arith.constant 0 : index
    %31 = vector.load %arg1[%30, %c0_16, %c0_17] : memref<8x16x32xf32, #tpu.memory_space<vmem>>, vector<1x16x32xf32>
    %32 = vector.shape_cast %31 : vector<1x16x32xf32> to vector<16x32xf32>
    %cst_18 = arith.constant dense<0.000000e+00> : vector<64x32xf32>
    %33 = tpu.matmul %1, %32, %cst_18 {dimension_numbers = #tpu.dot_dimension_numbers<[1], [0], [0], [1], [0, 0, 1, 1], [], []>} : vector<64x16xf32>, vector<16x32xf32>, vector<64x32xf32> -> vector<64x32xf32>
    %34 = vector.extract_strided_slice %33 {offsets = [0, 0], sizes = [16, 32], strides = [1, 1]} : vector<64x32xf32> to vector<16x32xf32>
    %35 = arith.mulf %34, %3 : vector<16x32xf32>
    %36 = vector.extract_strided_slice %33 {offsets = [16, 0], sizes = [16, 32], strides = [1, 1]} : vector<64x32xf32> to vector<16x32xf32>
    %37 = arith.mulf %36, %5 : vector<16x32xf32>
    %38 = arith.addf %35, %37 : vector<16x32xf32>
    %39 = vector.extract_strided_slice %33 {offsets = [32, 0], sizes = [16, 32], strides = [1, 1]} : vector<64x32xf32> to vector<16x32xf32>
    %40 = arith.mulf %39, %7 : vector<16x32xf32>
    %41 = arith.addf %38, %40 : vector<16x32xf32>
    %42 = vector.extract_strided_slice %33 {offsets = [48, 0], sizes = [16, 32], strides = [1, 1]} : vector<64x32xf32> to vector<16x32xf32>
    %43 = arith.mulf %42, %9 : vector<16x32xf32>
    %44 = arith.addf %41, %43 : vector<16x32xf32>
    %45 = arith.addf %44, %0 : vector<16x32xf32>
    %46 = arith.index_cast %c1_i32 : i32 to index
    %c0_19 = arith.constant 0 : index
    %c0_20 = arith.constant 0 : index
    %47 = vector.load %arg5[%46, %c0_19, %c0_20] : memref<8x16x32xf32, #tpu.memory_space<vmem>>, vector<1x16x32xf32>
    %48 = vector.shape_cast %47 : vector<1x16x32xf32> to vector<16x32xf32>
    %49 = vector.shape_cast %45 : vector<16x32xf32> to vector<1x16x32xf32>
    tpu.vector_store %arg5[%46, %c0_19, %c0_20], %49 {strides = array<i32>} : memref<8x16x32xf32, #tpu.memory_space<vmem>>, vector<1x16x32xf32>,
    %c2_i32 = arith.constant 2 : i32
    %50 = arith.index_cast %c2_i32 : i32 to index
    %c0_21 = arith.constant 0 : index
    %c0_22 = arith.constant 0 : index
    %51 = vector.load %arg1[%50, %c0_21, %c0_22] : memref<8x16x32xf32, #tpu.memory_space<vmem>>, vector<1x16x32xf32>
    %52 = vector.shape_cast %51 : vector<1x16x32xf32> to vector<16x32xf32>
    %cst_23 = arith.constant dense<0.000000e+00> : vector<64x32xf32>
    %53 = tpu.matmul %1, %52, %cst_23 {dimension_numbers = #tpu.dot_dimension_numbers<[1], [0], [0], [1], [0, 0, 1, 1], [], []>} : vector<64x16xf32>, vector<16x32xf32>, vector<64x32xf32> -> vector<64x32xf32>
    %54 = vector.extract_strided_slice %53 {offsets = [0, 0], sizes = [16, 32], strides = [1, 1]} : vector<64x32xf32> to vector<16x32xf32>
    %55 = arith.mulf %54, %3 : vector<16x32xf32>
    %56 = vector.extract_strided_slice %53 {offsets = [16, 0], sizes = [16, 32], strides = [1, 1]} : vector<64x32xf32> to vector<16x32xf32>
    %57 = arith.mulf %56, %5 : vector<16x32xf32>
    %58 = arith.addf %55, %57 : vector<16x32xf32>
    %59 = vector.extract_strided_slice %53 {offsets = [32, 0], sizes = [16, 32], strides = [1, 1]} : vector<64x32xf32> to vector<16x32xf32>
    %60 = arith.mulf %59, %7 : vector<16x32xf32>
    %61 = arith.addf %58, %60 : vector<16x32xf32>
    %62 = vector.extract_strided_slice %53 {offsets = [48, 0], sizes = [16, 32], strides = [1, 1]} : vector<64x32xf32> to vector<16x32xf32>
    %63 = arith.mulf %62, %9 : vector<16x32xf32>
    %64 = arith.addf %61, %63 : vector<16x32xf32>
    %65 = arith.addf %64, %0 : vector<16x32xf32>
    %66 = arith.index_cast %c2_i32 : i32 to index
    %c0_24 = arith.constant 0 : index
    %c0_25 = arith.constant 0 : index
    %67 = vector.load %arg5[%66, %c0_24, %c0_25] : memref<8x16x32xf32, #tpu.memory_space<vmem>>, vector<1x16x32xf32>
    %68 = vector.shape_cast %67 : vector<1x16x32xf32> to vector<16x32xf32>
    %69 = vector.shape_cast %65 : vector<16x32xf32> to vector<1x16x32xf32>
    tpu.vector_store %arg5[%66, %c0_24, %c0_25], %69 {strides = array<i32>} : memref<8x16x32xf32, #tpu.memory_space<vmem>>, vector<1x16x32xf32>,
    %c3_i32 = arith.constant 3 : i32
    %70 = arith.index_cast %c3_i32 : i32 to index
    %c0_26 = arith.constant 0 : index
    %c0_27 = arith.constant 0 : index
    %71 = vector.load %arg1[%70, %c0_26, %c0_27] : memref<8x16x32xf32, #tpu.memory_space<vmem>>, vector<1x16x32xf32>
    %72 = vector.shape_cast %71 : vector<1x16x32xf32> to vector<16x32xf32>
    %cst_28 = arith.constant dense<0.000000e+00> : vector<64x32xf32>
    %73 = tpu.matmul %1, %72, %cst_28 {dimension_numbers = #tpu.dot_dimension_numbers<[1], [0], [0], [1], [0, 0, 1, 1], [], []>} : vector<64x16xf32>, vector<16x32xf32>, vector<64x32xf32> -> vector<64x32xf32>
    %74 = vector.extract_strided_slice %73 {offsets = [0, 0], sizes = [16, 32], strides = [1, 1]} : vector<64x32xf32> to vector<16x32xf32>
    %75 = arith.mulf %74, %3 : vector<16x32xf32>
    %76 = vector.extract_strided_slice %73 {offsets = [16, 0], sizes = [16, 32], strides = [1, 1]} : vector<64x32xf32> to vector<16x32xf32>
    %77 = arith.mulf %76, %5 : vector<16x32xf32>
    %78 = arith.addf %75, %77 : vector<16x32xf32>
    %79 = vector.extract_strided_slice %73 {offsets = [32, 0], sizes = [16, 32], strides = [1, 1]} : vector<64x32xf32> to vector<16x32xf32>
    %80 = arith.mulf %79, %7 : vector<16x32xf32>
    %81 = arith.addf %78, %80 : vector<16x32xf32>
    %82 = vector.extract_strided_slice %73 {offsets = [48, 0], sizes = [16, 32], strides = [1, 1]} : vector<64x32xf32> to vector<16x32xf32>
    %83 = arith.mulf %82, %9 : vector<16x32xf32>
    %84 = arith.addf %81, %83 : vector<16x32xf32>
    %85 = arith.addf %84, %0 : vector<16x32xf32>
    %86 = arith.index_cast %c3_i32 : i32 to index
    %c0_29 = arith.constant 0 : index
    %c0_30 = arith.constant 0 : index
    %87 = vector.load %arg5[%86, %c0_29, %c0_30] : memref<8x16x32xf32, #tpu.memory_space<vmem>>, vector<1x16x32xf32>
    %88 = vector.shape_cast %87 : vector<1x16x32xf32> to vector<16x32xf32>
    %89 = vector.shape_cast %85 : vector<16x32xf32> to vector<1x16x32xf32>
    tpu.vector_store %arg5[%86, %c0_29, %c0_30], %89 {strides = array<i32>} : memref<8x16x32xf32, #tpu.memory_space<vmem>>, vector<1x16x32xf32>,
    %c4_i32 = arith.constant 4 : i32
    %90 = arith.index_cast %c4_i32 : i32 to index
    %c0_31 = arith.constant 0 : index
    %c0_32 = arith.constant 0 : index
    %91 = vector.load %arg1[%90, %c0_31, %c0_32] : memref<8x16x32xf32, #tpu.memory_space<vmem>>, vector<1x16x32xf32>
    %92 = vector.shape_cast %91 : vector<1x16x32xf32> to vector<16x32xf32>
    %cst_33 = arith.constant dense<0.000000e+00> : vector<64x32xf32>
    %93 = tpu.matmul %1, %92, %cst_33 {dimension_numbers = #tpu.dot_dimension_numbers<[1], [0], [0], [1], [0, 0, 1, 1], [], []>} : vector<64x16xf32>, vector<16x32xf32>, vector<64x32xf32> -> vector<64x32xf32>
    %94 = vector.extract_strided_slice %93 {offsets = [0, 0], sizes = [16, 32], strides = [1, 1]} : vector<64x32xf32> to vector<16x32xf32>
    %95 = arith.mulf %94, %3 : vector<16x32xf32>
    %96 = vector.extract_strided_slice %93 {offsets = [16, 0], sizes = [16, 32], strides = [1, 1]} : vector<64x32xf32> to vector<16x32xf32>
    %97 = arith.mulf %96, %5 : vector<16x32xf32>
    %98 = arith.addf %95, %97 : vector<16x32xf32>
    %99 = vector.extract_strided_slice %93 {offsets = [32, 0], sizes = [16, 32], strides = [1, 1]} : vector<64x32xf32> to vector<16x32xf32>
    %100 = arith.mulf %99, %7 : vector<16x32xf32>
    %101 = arith.addf %98, %100 : vector<16x32xf32>
    %102 = vector.extract_strided_slice %93 {offsets = [48, 0], sizes = [16, 32], strides = [1, 1]} : vector<64x32xf32> to vector<16x32xf32>
    %103 = arith.mulf %102, %9 : vector<16x32xf32>
    %104 = arith.addf %101, %103 : vector<16x32xf32>
    %105 = arith.addf %104, %0 : vector<16x32xf32>
    %106 = arith.index_cast %c4_i32 : i32 to index
    %c0_34 = arith.constant 0 : index
    %c0_35 = arith.constant 0 : index
    %107 = vector.load %arg5[%106, %c0_34, %c0_35] : memref<8x16x32xf32, #tpu.memory_space<vmem>>, vector<1x16x32xf32>
    %108 = vector.shape_cast %107 : vector<1x16x32xf32> to vector<16x32xf32>
    %109 = vector.shape_cast %105 : vector<16x32xf32> to vector<1x16x32xf32>
    tpu.vector_store %arg5[%106, %c0_34, %c0_35], %109 {strides = array<i32>} : memref<8x16x32xf32, #tpu.memory_space<vmem>>, vector<1x16x32xf32>,
    %c5_i32 = arith.constant 5 : i32
    %110 = arith.index_cast %c5_i32 : i32 to index
    %c0_36 = arith.constant 0 : index
    %c0_37 = arith.constant 0 : index
    %111 = vector.load %arg1[%110, %c0_36, %c0_37] : memref<8x16x32xf32, #tpu.memory_space<vmem>>, vector<1x16x32xf32>
    %112 = vector.shape_cast %111 : vector<1x16x32xf32> to vector<16x32xf32>
    %cst_38 = arith.constant dense<0.000000e+00> : vector<64x32xf32>
    %113 = tpu.matmul %1, %112, %cst_38 {dimension_numbers = #tpu.dot_dimension_numbers<[1], [0], [0], [1], [0, 0, 1, 1], [], []>} : vector<64x16xf32>, vector<16x32xf32>, vector<64x32xf32> -> vector<64x32xf32>
    %114 = vector.extract_strided_slice %113 {offsets = [0, 0], sizes = [16, 32], strides = [1, 1]} : vector<64x32xf32> to vector<16x32xf32>
    %115 = arith.mulf %114, %3 : vector<16x32xf32>
    %116 = vector.extract_strided_slice %113 {offsets = [16, 0], sizes = [16, 32], strides = [1, 1]} : vector<64x32xf32> to vector<16x32xf32>
    %117 = arith.mulf %116, %5 : vector<16x32xf32>
    %118 = arith.addf %115, %117 : vector<16x32xf32>
    %119 = vector.extract_strided_slice %113 {offsets = [32, 0], sizes = [16, 32], strides = [1, 1]} : vector<64x32xf32> to vector<16x32xf32>
    %120 = arith.mulf %119, %7 : vector<16x32xf32>
    %121 = arith.addf %118, %120 : vector<16x32xf32>
    %122 = vector.extract_strided_slice %113 {offsets = [48, 0], sizes = [16, 32], strides = [1, 1]} : vector<64x32xf32> to vector<16x32xf32>
    %123 = arith.mulf %122, %9 : vector<16x32xf32>
    %124 = arith.addf %121, %123 : vector<16x32xf32>
    %125 = arith.addf %124, %0 : vector<16x32xf32>
    %126 = arith.index_cast %c5_i32 : i32 to index
    %c0_39 = arith.constant 0 : index
    %c0_40 = arith.constant 0 : index
    %127 = vector.load %arg5[%126, %c0_39, %c0_40] : memref<8x16x32xf32, #tpu.memory_space<vmem>>, vector<1x16x32xf32>
    %128 = vector.shape_cast %127 : vector<1x16x32xf32> to vector<16x32xf32>
    %129 = vector.shape_cast %125 : vector<16x32xf32> to vector<1x16x32xf32>
    tpu.vector_store %arg5[%126, %c0_39, %c0_40], %129 {strides = array<i32>} : memref<8x16x32xf32, #tpu.memory_space<vmem>>, vector<1x16x32xf32>,
    %c6_i32 = arith.constant 6 : i32
    %130 = arith.index_cast %c6_i32 : i32 to index
    %c0_41 = arith.constant 0 : index
    %c0_42 = arith.constant 0 : index
    %131 = vector.load %arg1[%130, %c0_41, %c0_42] : memref<8x16x32xf32, #tpu.memory_space<vmem>>, vector<1x16x32xf32>
    %132 = vector.shape_cast %131 : vector<1x16x32xf32> to vector<16x32xf32>
    %cst_43 = arith.constant dense<0.000000e+00> : vector<64x32xf32>
    %133 = tpu.matmul %1, %132, %cst_43 {dimension_numbers = #tpu.dot_dimension_numbers<[1], [0], [0], [1], [0, 0, 1, 1], [], []>} : vector<64x16xf32>, vector<16x32xf32>, vector<64x32xf32> -> vector<64x32xf32>
    %134 = vector.extract_strided_slice %133 {offsets = [0, 0], sizes = [16, 32], strides = [1, 1]} : vector<64x32xf32> to vector<16x32xf32>
    %135 = arith.mulf %134, %3 : vector<16x32xf32>
    %136 = vector.extract_strided_slice %133 {offsets = [16, 0], sizes = [16, 32], strides = [1, 1]} : vector<64x32xf32> to vector<16x32xf32>
    %137 = arith.mulf %136, %5 : vector<16x32xf32>
    %138 = arith.addf %135, %137 : vector<16x32xf32>
    %139 = vector.extract_strided_slice %133 {offsets = [32, 0], sizes = [16, 32], strides = [1, 1]} : vector<64x32xf32> to vector<16x32xf32>
    %140 = arith.mulf %139, %7 : vector<16x32xf32>
    %141 = arith.addf %138, %140 : vector<16x32xf32>
    %142 = vector.extract_strided_slice %133 {offsets = [48, 0], sizes = [16, 32], strides = [1, 1]} : vector<64x32xf32> to vector<16x32xf32>
    %143 = arith.mulf %142, %9 : vector<16x32xf32>
    %144 = arith.addf %141, %143 : vector<16x32xf32>
    %145 = arith.addf %144, %0 : vector<16x32xf32>
    %146 = arith.index_cast %c6_i32 : i32 to index
    %c0_44 = arith.constant 0 : index
    %c0_45 = arith.constant 0 : index
    %147 = vector.load %arg5[%146, %c0_44, %c0_45] : memref<8x16x32xf32, #tpu.memory_space<vmem>>, vector<1x16x32xf32>
    %148 = vector.shape_cast %147 : vector<1x16x32xf32> to vector<16x32xf32>
    %149 = vector.shape_cast %145 : vector<16x32xf32> to vector<1x16x32xf32>
    tpu.vector_store %arg5[%146, %c0_44, %c0_45], %149 {strides = array<i32>} : memref<8x16x32xf32, #tpu.memory_space<vmem>>, vector<1x16x32xf32>,
    %c7_i32 = arith.constant 7 : i32
    %150 = arith.index_cast %c7_i32 : i32 to index
    %c0_46 = arith.constant 0 : index
    %c0_47 = arith.constant 0 : index
    %151 = vector.load %arg1[%150, %c0_46, %c0_47] : memref<8x16x32xf32, #tpu.memory_space<vmem>>, vector<1x16x32xf32>
    %152 = vector.shape_cast %151 : vector<1x16x32xf32> to vector<16x32xf32>
    %cst_48 = arith.constant dense<0.000000e+00> : vector<64x32xf32>
    %153 = tpu.matmul %1, %152, %cst_48 {dimension_numbers = #tpu.dot_dimension_numbers<[1], [0], [0], [1], [0, 0, 1, 1], [], []>} : vector<64x16xf32>, vector<16x32xf32>, vector<64x32xf32> -> vector<64x32xf32>
    %154 = vector.extract_strided_slice %153 {offsets = [0, 0], sizes = [16, 32], strides = [1, 1]} : vector<64x32xf32> to vector<16x32xf32>
    %155 = arith.mulf %154, %3 : vector<16x32xf32>
    %156 = vector.extract_strided_slice %153 {offsets = [16, 0], sizes = [16, 32], strides = [1, 1]} : vector<64x32xf32> to vector<16x32xf32>
    %157 = arith.mulf %156, %5 : vector<16x32xf32>
    %158 = arith.addf %155, %157 : vector<16x32xf32>
    %159 = vector.extract_strided_slice %153 {offsets = [32, 0], sizes = [16, 32], strides = [1, 1]} : vector<64x32xf32> to vector<16x32xf32>
    %160 = arith.mulf %159, %7 : vector<16x32xf32>
    %161 = arith.addf %158, %160 : vector<16x32xf32>
    %162 = vector.extract_strided_slice %153 {offsets = [48, 0], sizes = [16, 32], strides = [1, 1]} : vector<64x32xf32> to vector<16x32xf32>
    %163 = arith.mulf %162, %9 : vector<16x32xf32>
    %164 = arith.addf %161, %163 : vector<16x32xf32>
    %165 = arith.addf %164, %0 : vector<16x32xf32>
    %166 = arith.index_cast %c7_i32 : i32 to index
    %c0_49 = arith.constant 0 : index
    %c0_50 = arith.constant 0 : index
    %167 = vector.load %arg5[%166, %c0_49, %c0_50] : memref<8x16x32xf32, #tpu.memory_space<vmem>>, vector<1x16x32xf32>
    %168 = vector.shape_cast %167 : vector<1x16x32xf32> to vector<16x32xf32>
    %169 = vector.shape_cast %165 : vector<16x32xf32> to vector<1x16x32xf32>
    tpu.vector_store %arg5[%166, %c0_49, %c0_50], %169 {strides = array<i32>} : memref<8x16x32xf32, #tpu.memory_space<vmem>>, vector<1x16x32xf32>,
    %c8_i32 = arith.constant 8 : i32
    return
  }
  func.func @transform_0(%arg0: i32) -> (i32, i32, i32) {
    %c0_i32 = arith.constant 0 : i32
    %c0_i32_0 = arith.constant 0 : i32
    %c0_i32_1 = arith.constant 0 : i32
    return %arg0, %c0_i32, %c0_i32_0 : i32, i32, i32
  }
  func.func @transform_1(%arg0: i32) -> (i32, i32) {
    %c0_i32 = arith.constant 0 : i32
    %c0_i32_0 = arith.constant 0 : i32
    %c0_i32_1 = arith.constant 0 : i32
    return %c0_i32, %c0_i32_0 : i32, i32
  }
  func.func @transform_2(%arg0: i32) -> (i32, i32, i32) {
    %c0_i32 = arith.constant 0 : i32
    %c0_i32_0 = arith.constant 0 : i32
    %c0_i32_1 = arith.constant 0 : i32
    %c0_i32_2 = arith.constant 0 : i32
    return %c0_i32, %c0_i32_0, %c0_i32_1 : i32, i32, i32
  }
  func.func @transform_3(%arg0: i32) -> (i32, i32) {
    %c0_i32 = arith.constant 0 : i32
    %c0_i32_0 = arith.constant 0 : i32
    %c0_i32_1 = arith.constant 0 : i32
    return %c0_i32, %c0_i32_0 : i32, i32
  }
  func.func @transform_4(%arg0: i32) -> (i32, i32, i32) {
    %c0_i32 = arith.constant 0 : i32
    %c0_i32_0 = arith.constant 0 : i32
    %c0_i32_1 = arith.constant 0 : i32
    return %arg0, %c0_i32, %c0_i32_0 : i32, i32, i32
  }
}

</mosaic_0001>

<llo_original>
// kernel: tpu_custom_call.1
$region0: #{tpu_custom_call.1}
  #allocation0 [shape = 'u32[]', space=smem, size = 0x4, offset = 0x4, fixed_abs, tag = 'smem constant byte address 0x4 - core index']
  #allocation1 [shape = 'u32[144,128]{1,0:T(1,128)}', space=vmem, size = 0x12000, scoped, tag = 'internal scratch']
  %s0 = inlined_call_operand.hbm [shape: f32[8,16,32], index: 0, kind: input, shape index: {}]
  %s1 = inlined_call_operand.vmem [shape: f32[64,16], index: 1, kind: input, shape index: {}]
  %s2 = inlined_call_operand.vmem [shape: f32[4,16,32], index: 2, kind: input, shape index: {}]
  %s3 = inlined_call_operand.vmem [shape: f32[16,32], index: 3, kind: input, shape index: {}]
  %s4 = inlined_call_operand.hbm [shape: f32[8,16,32], index: 4, kind: output, shape index: {}]
  %s5 = sld [smem:[#allocation0]]
  $region30: #{tpu_custom_call.1} parent=0
    _
  %s7 = ssub.s32 1, %s5
  %s8 = scalar_select 0, %s7, %s5
  $region1: #{tpu_custom_call.1} parent=0
    #allocation2 [shape = 'u8[65536]{0}', space=vmem, size = 0x10000, scoped, tag = 'input window, operand 0, single buffered']
    #allocation3 [shape = 's32[1]{0}', space=sflag, size = 0x4, scoped, tag = 'scoped memory for tpu_custom_call.1']
    #allocation4 [shape = 's32[1]{0}', space=sflag, size = 0x4, scoped, tag = 'scoped memory for tpu_custom_call.1']
    #allocation5 [shape = 'u8[65536]{0}', space=vmem, size = 0x10000, scoped, tag = 'output window, operand 0, single buffered']
    %9 = vsyncpa [#allocation3], 0
    %10 = vsyncpa [#allocation4], 0
    // Predicated region
    $region2: #{tpu_custom_call.1} parent=1 // pred_check
      _
    $region3: #{tpu_custom_call.1} parent=1 // pred_check_branch
      %12 = sbr.rel (0) target = $region5
    $region4: #{tpu_custom_call.1} parent=1 // pred_region
      %s14 = ssub.s32 2048, 2048
      %15 = vsyncadd [#allocation3], %s14
      %s16 = sshll.u32 [#allocation2], 4
      %s17 = int_to_ptr.vmem [resolvable:$true] %s16
      %22 = dma.hbm_to_vmem [thread:$0]  %s0, 2048, %s17, [#allocation3], 128, 128, 8
    $region5: #{tpu_custom_call.1} parent=1 // pred_fallthru
      _
    // Predicated region
    $region6: #{tpu_custom_call.1} parent=1 // pred_check
      _
    $region7: #{tpu_custom_call.1} parent=1 // pred_check_branch
      %24 = sbr.rel (0) target = $region9
    $region8: #{tpu_custom_call.1} parent=1 // pred_region
      _
    $region9: #{tpu_custom_call.1} parent=1 // pred_fallthru
      _
    // Predicated region
    $region10: #{tpu_custom_call.1} parent=1 // pred_check
      _
    $region11: #{tpu_custom_call.1} parent=1 // pred_check_branch
      %26 = sbr.rel (0) target = $region13
    $region12: #{tpu_custom_call.1} parent=1 // pred_region
      _
    $region13: #{tpu_custom_call.1} parent=1 // pred_fallthru
      _
    // Predicated region
    $region14: #{tpu_custom_call.1} parent=1 // pred_check
      _
    $region15: #{tpu_custom_call.1} parent=1 // pred_check_branch
      %28 = sbr.rel (0) target = $region17
    $region16: #{tpu_custom_call.1} parent=1 // pred_region
      _
    $region17: #{tpu_custom_call.1} parent=1 // pred_fallthru
      _
    // Predicated region
    $region18: #{tpu_custom_call.1} parent=1 // pred_check
      _
    $region19: #{tpu_custom_call.1} parent=1 // pred_check_branch
      %30 = sbr.rel (0) target = $region21
    $region20: #{tpu_custom_call.1} parent=1 // pred_region
      %31 = dma.done [#allocation3], 2048
    $region21: #{tpu_custom_call.1} parent=1 // pred_fallthru
      _
    %v32 = vld [vmem:[%s3] sm:$0xff]
    %v33 = vld [vmem:[%s3 + $0x8] sm:$0xff]
    %v34 = vld [vmem:[%s1] sm:$0xff]
    %v35 = vld [vmem:[%s1 + $0x8] sm:$0xff]
    %v36 = vld [vmem:[%s1 + $0x10] sm:$0xff]
    %v37 = vld [vmem:[%s1 + $0x18] sm:$0xff]
    %v38 = vld [vmem:[%s1 + $0x20] sm:$0xff]
    %v39 = vld [vmem:[%s1 + $0x28] sm:$0xff]
    %v40 = vld [vmem:[%s1 + $0x30] sm:$0xff]
    %v41 = vld [vmem:[%s1 + $0x38] sm:$0xff]
    %v42 = vld [vmem:[%s2] sm:$0xff]
    %v43 = vld [vmem:[%s2 + $0x8] sm:$0xff]
    %s44 = scalar_lea.vmem %s2, 16
    %v45 = vld [vmem:[%s44] sm:$0xff]
    %v46 = vld [vmem:[%s44 + $0x8] sm:$0xff]
    %s47 = scalar_lea.vmem %s2, 32
    %v48 = vld [vmem:[%s47] sm:$0xff]
    %v49 = vld [vmem:[%s47 + $0x8] sm:$0xff]
    %s50 = scalar_lea.vmem %s2, 48
    %v51 = vld [vmem:[%s50] sm:$0xff]
    %v52 = vld [vmem:[%s50 + $0x8] sm:$0xff]
    %v53 = vld [vmem:[#allocation2] sm:$0xff]
    %v54 = vld [vmem:[#allocation2 + $0x8] sm:$0xff]
    %vm55 = vcmask 130048
    %v57 = vsel %vm55, %v34, 0
    %v60 = vsel %vm55, %v35, 0
    %v63 = vsel %vm55, %v36, 0
    %v66 = vsel %vm55, %v37, 0
    %v69 = vsel %vm55, %v38, 0
    %v72 = vsel %vm55, %v39, 0
    %v75 = vsel %vm55, %v40, 0
    %v78 = vsel %vm55, %v41, 0
    %80 = vmatprep.subr.mxu0 0.0
    %81 = vmatpush1.msra.mxu0 %v53
    %82 = vmatprep.subr.mxu0 0.0
    %83 = vmatpush1.msra.mxu0 %v54
    %84 = vmatprep.subr.mxu0 0.0
    %85 = vmatpush1.msra.mxu0 0.0
    %86 = vmatprep.subr.mxu0 0.0
    %87 = vmatpush1.msra.mxu0 0.0
    %88 = vmatprep.subr.mxu0 0.0
    %89 = vmatpush1.msra.mxu0 0.0
    %90 = vmatprep.subr.mxu0 0.0
    %91 = vmatpush1.msra.mxu0 0.0
    %92 = vmatprep.subr.mxu0 0.0
    %93 = vmatpush1.msra.mxu0 0.0
    %94 = vmatprep.subr.mxu0 0.0
    %95 = vmatpush1.msra.mxu0 0.0
    %96 = vmatprep.subr.mxu0 0.0
    %97 = vmatpush1.msra.mxu0 0.0
    %98 = vmatprep.subr.mxu0 0.0
    %99 = vmatpush1.msra.mxu0 0.0
    %100 = vmatprep.subr.mxu0 0.0
    %101 = vmatpush1.msra.mxu0 0.0
    %102 = vmatprep.subr.mxu0 0.0
    %103 = vmatpush1.msra.mxu0 0.0
    %104 = vmatprep.subr.mxu0 0.0
    %105 = vmatpush1.msra.mxu0 0.0
    %106 = vmatprep.subr.mxu0 0.0
    %107 = vmatpush1.msra.mxu0 0.0
    %108 = vmatprep.subr.mxu0 0.0
    %109 = vmatpush1.msra.mxu0 0.0
    %110 = vmatprep.subr.mxu0 0.0
    %111 = vmatpush1.msra.mxu0 0.0
    %112 = vmatprep.subr.mxu0 0.0
    %113 = vmatpush1.msra.mxu0 0.0
    %114 = vmatprep.subr.mxu0 0.0
    %115 = vmatpush1.msra.mxu0 0.0
    %116 = vmatprep.subr.mxu0 0.0
    %117 = vmatpush1.msra.mxu0 0.0
    %118 = vmatprep.subr.mxu0 0.0
    %119 = vmatpush1.msra.mxu0 0.0
    %120 = vmatprep.subr.mxu0 0.0
    %121 = vmatpush1.msra.mxu0 0.0
    %122 = vmatprep.subr.mxu0 0.0
    %123 = vmatpush1.msra.mxu0 0.0
    %124 = vmatprep.subr.mxu0 0.0
    %125 = vmatpush1.msra.mxu0 0.0
    %126 = vmatprep.subr.mxu0 0.0
    %127 = vmatpush1.msra.mxu0 0.0
    %128 = vmatprep.subr.mxu0 0.0
    %129 = vmatpush1.msra.mxu0 0.0
    %130 = vmatprep.subr.mxu0 0.0
    %131 = vmatpush1.msra.mxu0 0.0
    %132 = vmatprep.subr.mxu0 0.0
    %133 = vmatpush1.msra.mxu0 0.0
    %134 = vmatprep.subr.mxu0 0.0
    %135 = vmatpush1.msra.mxu0 0.0
    %136 = vmatprep.subr.mxu0 0.0
    %137 = vmatpush1.msra.mxu0 0.0
    %138 = vmatprep.subr.mxu0 0.0
    %139 = vmatpush1.msra.mxu0 0.0
    %140 = vmatprep.subr.mxu0 0.0
    %141 = vmatpush1.msra.mxu0 0.0
    %142 = vmatprep.subr.mxu0 0.0
    %143 = vmatpush1.msra.mxu0 0.0
    %144 = vmatprep.mubr.f32.mxu0 0.0
    %145 = vmatmul.mubr.f32.gmra.mrb[0].mxu0 %v57
    %v146 = vpop.f32.mrb[0].mxu0
    %v147 = vadd.f32 0.0, %v146
    %v148 = vpop.f32.mrb[0].mxu0
    %149 = vmatprep.mubr.f32.mxu0 0.0
    %150 = vmatmul.mubr.f32.gmra.mrb[0].mxu0 %v60
    %v151 = vpop.f32.mrb[0].mxu0
    %v152 = vadd.f32 0.0, %v151
    %v153 = vpop.f32.mrb[0].mxu0
    %154 = vmatprep.mubr.f32.mxu0 0.0
    %155 = vmatmul.mubr.f32.gmra.mrb[0].mxu0 %v63
    %v156 = vpop.f32.mrb[0].mxu0
    %v157 = vadd.f32 0.0, %v156
    %v158 = vpop.f32.mrb[0].mxu0
    %159 = vmatprep.mubr.f32.mxu0 0.0
    %160 = vmatmul.mubr.f32.gmra.mrb[0].mxu0 %v66
    %v161 = vpop.f32.mrb[0].mxu0
    %v162 = vadd.f32 0.0, %v161
    %v163 = vpop.f32.mrb[0].mxu0
    %164 = vmatprep.mubr.f32.mxu0 0.0
    %165 = vmatmul.mubr.f32.gmra.mrb[0].mxu0 %v69
    %v166 = vpop.f32.mrb[0].mxu0
    %v167 = vadd.f32 0.0, %v166
    %v168 = vpop.f32.mrb[0].mxu0
    %169 = vmatprep.mubr.f32.mxu0 0.0
    %170 = vmatmul.mubr.f32.gmra.mrb[0].mxu0 %v72
    %v171 = vpop.f32.mrb[0].mxu0
    %v172 = vadd.f32 0.0, %v171
    %v173 = vpop.f32.mrb[0].mxu0
    %174 = vmatprep.mubr.f32.mxu0 0.0
    %175 = vmatmul.mubr.f32.gmra.mrb[0].mxu0 %v75
    %v176 = vpop.f32.mrb[0].mxu0
    %v177 = vadd.f32 0.0, %v176
    %v178 = vpop.f32.mrb[0].mxu0
    %179 = vmatprep.mubr.f32.mxu0 0.0
    %180 = vmatmul.mubr.f32.gmra.mrb[0].mxu0 %v78
    %v181 = vpop.f32.mrb[0].mxu0
    %v182 = vadd.f32 0.0, %v181
    %v183 = vpop.f32.mrb[0].mxu0
    %184 = vdwg.mxu0
    %v185 = vmul.f32 %v147, %v42
    %v186 = vmul.f32 %v152, %v43
    %v187 = vmul.f32 %v157, %v45
    %v188 = vmul.f32 %v162, %v46
    %v189 = vadd.f32 %v185, %v187
    %v190 = vadd.f32 %v186, %v188
    %v191 = vmul.f32 %v167, %v48
    %v192 = vmul.f32 %v172, %v49
    %v193 = vadd.f32 %v189, %v191
    %v194 = vadd.f32 %v190, %v192
    %v195 = vmul.f32 %v177, %v51
    %v196 = vmul.f32 %v182, %v52
    %v197 = vadd.f32 %v193, %v195
    %v198 = vadd.f32 %v194, %v196
    %v199 = vadd.f32 %v197, %v32
    %v200 = vadd.f32 %v198, %v33
    %vm201 = vcmask 261120
    %202 = vst.msk [vmem:[#allocation5] sm:$0xff] %vm201, %v199
    %203 = vst.msk [vmem:[#allocation5 + $0x8] sm:$0xff] %vm201, %v200
    %s204 = scalar_lea.vmem [#allocation2], 16
    %v205 = vld [vmem:[%s204] sm:$0xff]
    %v206 = vld [vmem:[%s204 + $0x8] sm:$0xff]
    %207 = vmatprep.subr.mxu0 0.0
    %208 = vmatpush1.msra.mxu0 %v205
    %209 = vmatprep.subr.mxu0 0.0
    %210 = vmatpush1.msra.mxu0 %v206
    %211 = vmatprep.subr.mxu0 0.0
    %212 = vmatpush1.msra.mxu0 0.0
    %213 = vmatprep.subr.mxu0 0.0
    %214 = vmatpush1.msra.mxu0 0.0
    %215 = vmatprep.subr.mxu0 0.0
    %216 = vmatpush1.msra.mxu0 0.0
    %217 = vmatprep.subr.mxu0 0.0
    %218 = vmatpush1.msra.mxu0 0.0
    %219 = vmatprep.subr.mxu0 0.0
    %220 = vmatpush1.msra.mxu0 0.0
    %221 = vmatprep.subr.mxu0 0.0
    %222 = vmatpush1.msra.mxu0 0.0
    %223 = vmatprep.subr.mxu0 0.0
    %224 = vmatpush1.msra.mxu0 0.0
    %225 = vmatprep.subr.mxu0 0.0
    %226 = vmatpush1.msra.mxu0 0.0
    %227 = vmatprep.subr.mxu0 0.0
    %228 = vmatpush1.msra.mxu0 0.0
    %229 = vmatprep.subr.mxu0 0.0
    %230 = vmatpush1.msra.mxu0 0.0
    %231 = vmatprep.subr.mxu0 0.0
    %232 = vmatpush1.msra.mxu0 0.0
    %233 = vmatprep.subr.mxu0 0.0
    %234 = vmatpush1.msra.mxu0 0.0
    %235 = vmatprep.subr.mxu0 0.0
    %236 = vmatpush1.msra.mxu0 0.0
    %237 = vmatprep.subr.mxu0 0.0
    %238 = vmatpush1.msra.mxu0 0.0
    %239 = vmatprep.subr.mxu0 0.0
    %240 = vmatpush1.msra.mxu0 0.0
    %241 = vmatprep.subr.mxu0 0.0
    %242 = vmatpush1.msra.mxu0 0.0
    %243 = vmatprep.subr.mxu0 0.0
    %244 = vmatpush1.msra.mxu0 0.0
    %245 = vmatprep.subr.mxu0 0.0
    %246 = vmatpush1.msra.mxu0 0.0
    %247 = vmatprep.subr.mxu0 0.0
    %248 = vmatpush1.msra.mxu0 0.0
    %249 = vmatprep.subr.mxu0 0.0
    %250 = vmatpush1.msra.mxu0 0.0
    %251 = vmatprep.subr.mxu0 0.0
    %252 = vmatpush1.msra.mxu0 0.0
    %253 = vmatprep.subr.mxu0 0.0
    %254 = vmatpush1.msra.mxu0 0.0
    %255 = vmatprep.subr.mxu0 0.0
    %256 = vmatpush1.msra.mxu0 0.0
    %257 = vmatprep.subr.mxu0 0.0
    %258 = vmatpush1.msra.mxu0 0.0
    %259 = vmatprep.subr.mxu0 0.0
    %260 = vmatpush1.msra.mxu0 0.0
    %261 = vmatprep.subr.mxu0 0.0
    %262 = vmatpush1.msra.mxu0 0.0
    %263 = vmatprep.subr.mxu0 0.0
    %264 = vmatpush1.msra.mxu0 0.0
    %265 = vmatprep.subr.mxu0 0.0
    %266 = vmatpush1.msra.mxu0 0.0
    %267 = vmatprep.subr.mxu0 0.0
    %268 = vmatpush1.msra.mxu0 0.0
    %269 = vmatprep.subr.mxu0 0.0
    %270 = vmatpush1.msra.mxu0 0.0
    %271 = vmatprep.mubr.f32.mxu0 0.0
    %272 = vmatmul.mubr.f32.gmra.mrb[0].mxu0 %v57
    %v273 = vpop.f32.mrb[0].mxu0
    %v274 = vadd.f32 0.0, %v273
    %v275 = vpop.f32.mrb[0].mxu0
    %276 = vmatprep.mubr.f32.mxu0 0.0
    %277 = vmatmul.mubr.f32.gmra.mrb[0].mxu0 %v60
    %v278 = vpop.f32.mrb[0].mxu0
    %v279 = vadd.f32 0.0, %v278
    %v280 = vpop.f32.mrb[0].mxu0
    %281 = vmatprep.mubr.f32.mxu0 0.0
    %282 = vmatmul.mubr.f32.gmra.mrb[0].mxu0 %v63
    %v283 = vpop.f32.mrb[0].mxu0
    %v284 = vadd.f32 0.0, %v283
    %v285 = vpop.f32.mrb[0].mxu0
    %286 = vmatprep.mubr.f32.mxu0 0.0
    %287 = vmatmul.mubr.f32.gmra.mrb[0].mxu0 %v66
    %v288 = vpop.f32.mrb[0].mxu0
    %v289 = vadd.f32 0.0, %v288
    %v290 = vpop.f32.mrb[0].mxu0
    %291 = vmatprep.mubr.f32.mxu0 0.0
    %292 = vmatmul.mubr.f32.gmra.mrb[0].mxu0 %v69
    %v293 = vpop.f32.mrb[0].mxu0
    %v294 = vadd.f32 0.0, %v293
    %v295 = vpop.f32.mrb[0].mxu0
    %296 = vmatprep.mubr.f32.mxu0 0.0
    %297 = vmatmul.mubr.f32.gmra.mrb[0].mxu0 %v72
    %v298 = vpop.f32.mrb[0].mxu0
    %v299 = vadd.f32 0.0, %v298
    %v300 = vpop.f32.mrb[0].mxu0
    %301 = vmatprep.mubr.f32.mxu0 0.0
    %302 = vmatmul.mubr.f32.gmra.mrb[0].mxu0 %v75
    %v303 = vpop.f32.mrb[0].mxu0
    %v304 = vadd.f32 0.0, %v303
    %v305 = vpop.f32.mrb[0].mxu0
    %306 = vmatprep.mubr.f32.mxu0 0.0
    %307 = vmatmul.mubr.f32.gmra.mrb[0].mxu0 %v78
    %v308 = vpop.f32.mrb[0].mxu0
    %v309 = vadd.f32 0.0, %v308
    %v310 = vpop.f32.mrb[0].mxu0
    %311 = vdwg.mxu0
    %v312 = vmul.f32 %v274, %v42
    %v313 = vmul.f32 %v279, %v43
    %v314 = vmul.f32 %v284, %v45
    %v315 = vmul.f32 %v289, %v46
    %v316 = vadd.f32 %v312, %v314
    %v317 = vadd.f32 %v313, %v315
    %v318 = vmul.f32 %v294, %v48
    %v319 = vmul.f32 %v299, %v49
    %v320 = vadd.f32 %v316, %v318
    %v321 = vadd.f32 %v317, %v319
    %v322 = vmul.f32 %v304, %v51
    %v323 = vmul.f32 %v309, %v52
    %v324 = vadd.f32 %v320, %v322
    %v325 = vadd.f32 %v321, %v323
    %v326 = vadd.f32 %v324, %v32
    %v327 = vadd.f32 %v325, %v33
    %s328 = scalar_lea.vmem [#allocation5], 16
    %329 = vst.msk [vmem:[%s328] sm:$0xff] %vm201, %v326
    %330 = vst.msk [vmem:[%s328 + $0x8] sm:$0xff] %vm201, %v327
    %s331 = scalar_lea.vmem [#allocation2], 32
    %v332 = vld [vmem:[%s331] sm:$0xff]
    %v333 = vld [vmem:[%s331 + $0x8] sm:$0xff]
    %334 = vmatprep.subr.mxu0 0.0
    %335 = vmatpush1.msra.mxu0 %v332
    %336 = vmatprep.subr.mxu0 0.0
    %337 = vmatpush1.msra.mxu0 %v333
    %338 = vmatprep.subr.mxu0 0.0
    %339 = vmatpush1.msra.mxu0 0.0
    %340 = vmatprep.subr.mxu0 0.0
    %341 = vmatpush1.msra.mxu0 0.0
    %342 = vmatprep.subr.mxu0 0.0
    %343 = vmatpush1.msra.mxu0 0.0
    %344 = vmatprep.subr.mxu0 0.0
    %345 = vmatpush1.msra.mxu0 0.0
    %346 = vmatprep.subr.mxu0 0.0
    %347 = vmatpush1.msra.mxu0 0.0
    %348 = vmatprep.subr.mxu0 0.0
    %349 = vmatpush1.msra.mxu0 0.0
    %350 = vmatprep.subr.mxu0 0.0
    %351 = vmatpush1.msra.mxu0 0.0
    %352 = vmatprep.subr.mxu0 0.0
    %353 = vmatpush1.msra.mxu0 0.0
    %354 = vmatprep.subr.mxu0 0.0
    %355 = vmatpush1.msra.mxu0 0.0
    %356 = vmatprep.subr.mxu0 0.0
    %357 = vmatpush1.msra.mxu0 0.0
    %358 = vmatprep.subr.mxu0 0.0
    %359 = vmatpush1.msra.mxu0 0.0
    %360 = vmatprep.subr.mxu0 0.0
    %361 = vmatpush1.msra.mxu0 0.0
    %362 = vmatprep.subr.mxu0 0.0
    %363 = vmatpush1.msra.mxu0 0.0
    %364 = vmatprep.subr.mxu0 0.0
    %365 = vmatpush1.msra.mxu0 0.0
    %366 = vmatprep.subr.mxu0 0.0
    %367 = vmatpush1.msra.mxu0 0.0
    %368 = vmatprep.subr.mxu0 0.0
    %369 = vmatpush1.msra.mxu0 0.0
    %370 = vmatprep.subr.mxu0 0.0
    %371 = vmatpush1.msra.mxu0 0.0
    %372 = vmatprep.subr.mxu0 0.0
    %373 = vmatpush1.msra.mxu0 0.0
    %374 = vmatprep.subr.mxu0 0.0
    %375 = vmatpush1.msra.mxu0 0.0
    %376 = vmatprep.subr.mxu0 0.0
    %377 = vmatpush1.msra.mxu0 0.0
    %378 = vmatprep.subr.mxu0 0.0
    %379 = vmatpush1.msra.mxu0 0.0
    %380 = vmatprep.subr.mxu0 0.0
    %381 = vmatpush1.msra.mxu0 0.0
    %382 = vmatprep.subr.mxu0 0.0
    %383 = vmatpush1.msra.mxu0 0.0
    %384 = vmatprep.subr.mxu0 0.0
    %385 = vmatpush1.msra.mxu0 0.0
    %386 = vmatprep.subr.mxu0 0.0
    %387 = vmatpush1.msra.mxu0 0.0
    %388 = vmatprep.subr.mxu0 0.0
    %389 = vmatpush1.msra.mxu0 0.0
    %390 = vmatprep.subr.mxu0 0.0
    %391 = vmatpush1.msra.mxu0 0.0
    %392 = vmatprep.subr.mxu0 0.0
    %393 = vmatpush1.msra.mxu0 0.0
    %394 = vmatprep.subr.mxu0 0.0
    %395 = vmatpush1.msra.mxu0 0.0
    %396 = vmatprep.subr.mxu0 0.0
    %397 = vmatpush1.msra.mxu0 0.0
    %398 = vmatprep.mubr.f32.mxu0 0.0
    %399 = vmatmul.mubr.f32.gmra.mrb[0].mxu0 %v57
    %v400 = vpop.f32.mrb[0].mxu0
    %v401 = vadd.f32 0.0, %v400
    %v402 = vpop.f32.mrb[0].mxu0
    %403 = vmatprep.mubr.f32.mxu0 0.0
    %404 = vmatmul.mubr.f32.gmra.mrb[0].mxu0 %v60
    %v405 = vpop.f32.mrb[0].mxu0
    %v406 = vadd.f32 0.0, %v405
    %v407 = vpop.f32.mrb[0].mxu0
    %408 = vmatprep.mubr.f32.mxu0 0.0
    %409 = vmatmul.mubr.f32.gmra.mrb[0].mxu0 %v63
    %v410 = vpop.f32.mrb[0].mxu0
    %v411 = vadd.f32 0.0, %v410
    %v412 = vpop.f32.mrb[0].mxu0
    %413 = vmatprep.mubr.f32.mxu0 0.0
    %414 = vmatmul.mubr.f32.gmra.mrb[0].mxu0 %v66
    %v415 = vpop.f32.mrb[0].mxu0
    %v416 = vadd.f32 0.0, %v415
    %v417 = vpop.f32.mrb[0].mxu0
    %418 = vmatprep.mubr.f32.mxu0 0.0
    %419 = vmatmul.mubr.f32.gmra.mrb[0].mxu0 %v69
    %v420 = vpop.f32.mrb[0].mxu0
    %v421 = vadd.f32 0.0, %v420
    %v422 = vpop.f32.mrb[0].mxu0
    %423 = vmatprep.mubr.f32.mxu0 0.0
    %424 = vmatmul.mubr.f32.gmra.mrb[0].mxu0 %v72
    %v425 = vpop.f32.mrb[0].mxu0
    %v426 = vadd.f32 0.0, %v425
    %v427 = vpop.f32.mrb[0].mxu0
    %428 = vmatprep.mubr.f32.mxu0 0.0
    %429 = vmatmul.mubr.f32.gmra.mrb[0].mxu0 %v75
    %v430 = vpop.f32.mrb[0].mxu0
    %v431 = vadd.f32 0.0, %v430
    %v432 = vpop.f32.mrb[0].mxu0
    %433 = vmatprep.mubr.f32.mxu0 0.0
    %434 = vmatmul.mubr.f32.gmra.mrb[0].mxu0 %v78
    %v435 = vpop.f32.mrb[0].mxu0
    %v436 = vadd.f32 0.0, %v435
    %v437 = vpop.f32.mrb[0].mxu0
    %438 = vdwg.mxu0
    %v439 = vmul.f32 %v401, %v42
    %v440 = vmul.f32 %v406, %v43
    %v441 = vmul.f32 %v411, %v45
    %v442 = vmul.f32 %v416, %v46
    %v443 = vadd.f32 %v439, %v441
    %v444 = vadd.f32 %v440, %v442
    %v445 = vmul.f32 %v421, %v48
    %v446 = vmul.f32 %v426, %v49
    %v447 = vadd.f32 %v443, %v445
    %v448 = vadd.f32 %v444, %v446
    %v449 = vmul.f32 %v431, %v51
    %v450 = vmul.f32 %v436, %v52
    %v451 = vadd.f32 %v447, %v449
    %v452 = vadd.f32 %v448, %v450
    %v453 = vadd.f32 %v451, %v32
    %v454 = vadd.f32 %v452, %v33
    %s455 = scalar_lea.vmem [#allocation5], 32
    %456 = vst.msk [vmem:[%s455] sm:$0xff] %vm201, %v453
    %457 = vst.msk [vmem:[%s455 + $0x8] sm:$0xff] %vm201, %v454
    %s458 = scalar_lea.vmem [#allocation2], 48
    %v459 = vld [vmem:[%s458] sm:$0xff]
    %v460 = vld [vmem:[%s458 + $0x8] sm:$0xff]
    %461 = vmatprep.subr.mxu0 0.0
    %462 = vmatpush1.msra.mxu0 %v459
    %463 = vmatprep.subr.mxu0 0.0
    %464 = vmatpush1.msra.mxu0 %v460
    %465 = vmatprep.subr.mxu0 0.0
    %466 = vmatpush1.msra.mxu0 0.0
    %467 = vmatprep.subr.mxu0 0.0
    %468 = vmatpush1.msra.mxu0 0.0
    %469 = vmatprep.subr.mxu0 0.0
    %470 = vmatpush1.msra.mxu0 0.0
    %471 = vmatprep.subr.mxu0 0.0
    %472 = vmatpush1.msra.mxu0 0.0
    %473 = vmatprep.subr.mxu0 0.0
    %474 = vmatpush1.msra.mxu0 0.0
    %475 = vmatprep.subr.mxu0 0.0
    %476 = vmatpush1.msra.mxu0 0.0
    %477 = vmatprep.subr.mxu0 0.0
    %478 = vmatpush1.msra.mxu0 0.0
    %479 = vmatprep.subr.mxu0 0.0
    %480 = vmatpush1.msra.mxu0 0.0
    %481 = vmatprep.subr.mxu0 0.0
    %482 = vmatpush1.msra.mxu0 0.0
    %483 = vmatprep.subr.mxu0 0.0
    %484 = vmatpush1.msra.mxu0 0.0
    %485 = vmatprep.subr.mxu0 0.0
    %486 = vmatpush1.msra.mxu0 0.0
    %487 = vmatprep.subr.mxu0 0.0
    %488 = vmatpush1.msra.mxu0 0.0
    %489 = vmatprep.subr.mxu0 0.0
    %490 = vmatpush1.msra.mxu0 0.0
    %491 = vmatprep.subr.mxu0 0.0
    %492 = vmatpush1.msra.mxu0 0.0
    %493 = vmatprep.subr.mxu0 0.0
    %494 = vmatpush1.msra.mxu0 0.0
    %495 = vmatprep.subr.mxu0 0.0
    %496 = vmatpush1.msra.mxu0 0.0
    %497 = vmatprep.subr.mxu0 0.0
    %498 = vmatpush1.msra.mxu0 0.0
    %499 = vmatprep.subr.mxu0 0.0
    %500 = vmatpush1.msra.mxu0 0.0
    %501 = vmatprep.subr.mxu0 0.0
    %502 = vmatpush1.msra.mxu0 0.0
    %503 = vmatprep.subr.mxu0 0.0
    %504 = vmatpush1.msra.mxu0 0.0
    %505 = vmatprep.subr.mxu0 0.0
    %506 = vmatpush1.msra.mxu0 0.0
    %507 = vmatprep.subr.mxu0 0.0
    %508 = vmatpush1.msra.mxu0 0.0
    %509 = vmatprep.subr.mxu0 0.0
    %510 = vmatpush1.msra.mxu0 0.0
    %511 = vmatprep.subr.mxu0 0.0
    %512 = vmatpush1.msra.mxu0 0.0
    %513 = vmatprep.subr.mxu0 0.0
    %514 = vmatpush1.msra.mxu0 0.0
    %515 = vmatprep.subr.mxu0 0.0
    %516 = vmatpush1.msra.mxu0 0.0
    %517 = vmatprep.subr.mxu0 0.0
    %518 = vmatpush1.msra.mxu0 0.0
    %519 = vmatprep.subr.mxu0 0.0
    %520 = vmatpush1.msra.mxu0 0.0
    %521 = vmatprep.subr.mxu0 0.0
    %522 = vmatpush1.msra.mxu0 0.0
    %523 = vmatprep.subr.mxu0 0.0
    %524 = vmatpush1.msra.mxu0 0.0
    %525 = vmatprep.mubr.f32.mxu0 0.0
    %526 = vmatmul.mubr.f32.gmra.mrb[0].mxu0 %v57
    %v527 = vpop.f32.mrb[0].mxu0
    %v528 = vadd.f32 0.0, %v527
    %v529 = vpop.f32.mrb[0].mxu0
    %530 = vmatprep.mubr.f32.mxu0 0.0
    %531 = vmatmul.mubr.f32.gmra.mrb[0].mxu0 %v60
    %v532 = vpop.f32.mrb[0].mxu0
    %v533 = vadd.f32 0.0, %v532
    %v534 = vpop.f32.mrb[0].mxu0
    %535 = vmatprep.mubr.f32.mxu0 0.0
    %536 = vmatmul.mubr.f32.gmra.mrb[0].mxu0 %v63
    %v537 = vpop.f32.mrb[0].mxu0
    %v538 = vadd.f32 0.0, %v537
    %v539 = vpop.f32.mrb[0].mxu0
    %540 = vmatprep.mubr.f32.mxu0 0.0
    %541 = vmatmul.mubr.f32.gmra.mrb[0].mxu0 %v66
    %v542 = vpop.f32.mrb[0].mxu0
    %v543 = vadd.f32 0.0, %v542
    %v544 = vpop.f32.mrb[0].mxu0
    %545 = vmatprep.mubr.f32.mxu0 0.0
    %546 = vmatmul.mubr.f32.gmra.mrb[0].mxu0 %v69
    %v547 = vpop.f32.mrb[0].mxu0
    %v548 = vadd.f32 0.0, %v547
    %v549 = vpop.f32.mrb[0].mxu0
    %550 = vmatprep.mubr.f32.mxu0 0.0
    %551 = vmatmul.mubr.f32.gmra.mrb[0].mxu0 %v72
    %v552 = vpop.f32.mrb[0].mxu0
    %v553 = vadd.f32 0.0, %v552
    %v554 = vpop.f32.mrb[0].mxu0
    %555 = vmatprep.mubr.f32.mxu0 0.0
    %556 = vmatmul.mubr.f32.gmra.mrb[0].mxu0 %v75
    %v557 = vpop.f32.mrb[0].mxu0
    %v558 = vadd.f32 0.0, %v557
    %v559 = vpop.f32.mrb[0].mxu0
    %560 = vmatprep.mubr.f32.mxu0 0.0
    %561 = vmatmul.mubr.f32.gmra.mrb[0].mxu0 %v78
    %v562 = vpop.f32.mrb[0].mxu0
    %v563 = vadd.f32 0.0, %v562
    %v564 = vpop.f32.mrb[0].mxu0
    %565 = vdwg.mxu0
    %v566 = vmul.f32 %v528, %v42
    %v567 = vmul.f32 %v533, %v43
    %v568 = vmul.f32 %v538, %v45
    %v569 = vmul.f32 %v543, %v46
    %v570 = vadd.f32 %v566, %v568
    %v571 = vadd.f32 %v567, %v569
    %v572 = vmul.f32 %v548, %v48
    %v573 = vmul.f32 %v553, %v49
    %v574 = vadd.f32 %v570, %v572
    %v575 = vadd.f32 %v571, %v573
    %v576 = vmul.f32 %v558, %v51
    %v577 = vmul.f32 %v563, %v52
    %v578 = vadd.f32 %v574, %v576
    %v579 = vadd.f32 %v575, %v577
    %v580 = vadd.f32 %v578, %v32
    %v581 = vadd.f32 %v579, %v33
    %s582 = scalar_lea.vmem [#allocation5], 48
    %583 = vst.msk [vmem:[%s582] sm:$0xff] %vm201, %v580
    %584 = vst.msk [vmem:[%s582 + $0x8] sm:$0xff] %vm201, %v581
    %s585 = scalar_lea.vmem [#allocation2], 64
    %v586 = vld [vmem:[%s585] sm:$0xff]
    %v587 = vld [vmem:[%s585 + $0x8] sm:$0xff]
    %588 = vmatprep.subr.mxu0 0.0
    %589 = vmatpush1.msra.mxu0 %v586
    %590 = vmatprep.subr.mxu0 0.0
    %591 = vmatpush1.msra.mxu0 %v587
    %592 = vmatprep.subr.mxu0 0.0
    %593 = vmatpush1.msra.mxu0 0.0
    %594 = vmatprep.subr.mxu0 0.0
    %595 = vmatpush1.msra.mxu0 0.0
    %596 = vmatprep.subr.mxu0 0.0
    %597 = vmatpush1.msra.mxu0 0.0
    %598 = vmatprep.subr.mxu0 0.0
    %599 = vmatpush1.msra.mxu0 0.0
    %600 = vmatprep.subr.mxu0 0.0
    %601 = vmatpush1.msra.mxu0 0.0
    %602 = vmatprep.subr.mxu0 0.0
    %603 = vmatpush1.msra.mxu0 0.0
    %604 = vmatprep.subr.mxu0 0.0
    %605 = vmatpush1.msra.mxu0 0.0
    %606 = vmatprep.subr.mxu0 0.0
    %607 = vmatpush1.msra.mxu0 0.0
    %608 = vmatprep.subr.mxu0 0.0
    %609 = vmatpush1.msra.mxu0 0.0
    %610 = vmatprep.subr.mxu0 0.0
    %611 = vmatpush1.msra.mxu0 0.0
    %612 = vmatprep.subr.mxu0 0.0
    %613 = vmatpush1.msra.mxu0 0.0
    %614 = vmatprep.subr.mxu0 0.0
    %615 = vmatpush1.msra.mxu0 0.0
    %616 = vmatprep.subr.mxu0 0.0
    %617 = vmatpush1.msra.mxu0 0.0
    %618 = vmatprep.subr.mxu0 0.0
    %619 = vmatpush1.msra.mxu0 0.0
    %620 = vmatprep.subr.mxu0 0.0
    %621 = vmatpush1.msra.mxu0 0.0
    %622 = vmatprep.subr.mxu0 0.0
    %623 = vmatpush1.msra.mxu0 0.0
    %624 = vmatprep.subr.mxu0 0.0
    %625 = vmatpush1.msra.mxu0 0.0
    %626 = vmatprep.subr.mxu0 0.0
    %627 = vmatpush1.msra.mxu0 0.0
    %628 = vmatprep.subr.mxu0 0.0
    %629 = vmatpush1.msra.mxu0 0.0
    %630 = vmatprep.subr.mxu0 0.0
    %631 = vmatpush1.msra.mxu0 0.0
    %632 = vmatprep.subr.mxu0 0.0
    %633 = vmatpush1.msra.mxu0 0.0
    %634 = vmatprep.subr.mxu0 0.0
    %635 = vmatpush1.msra.mxu0 0.0
    %636 = vmatprep.subr.mxu0 0.0
    %637 = vmatpush1.msra.mxu0 0.0
    %638 = vmatprep.subr.mxu0 0.0
    %639 = vmatpush1.msra.mxu0 0.0
    %640 = vmatprep.subr.mxu0 0.0
    %641 = vmatpush1.msra.mxu0 0.0
    %642 = vmatprep.subr.mxu0 0.0
    %643 = vmatpush1.msra.mxu0 0.0
    %644 = vmatprep.subr.mxu0 0.0
    %645 = vmatpush1.msra.mxu0 0.0
    %646 = vmatprep.subr.mxu0 0.0
    %647 = vmatpush1.msra.mxu0 0.0
    %648 = vmatprep.subr.mxu0 0.0
    %649 = vmatpush1.msra.mxu0 0.0
    %650 = vmatprep.subr.mxu0 0.0
    %651 = vmatpush1.msra.mxu0 0.0
    %652 = vmatprep.mubr.f32.mxu0 0.0
    %653 = vmatmul.mubr.f32.gmra.mrb[0].mxu0 %v57
    %v654 = vpop.f32.mrb[0].mxu0
    %v655 = vadd.f32 0.0, %v654
    %v656 = vpop.f32.mrb[0].mxu0
    %657 = vmatprep.mubr.f32.mxu0 0.0
    %658 = vmatmul.mubr.f32.gmra.mrb[0].mxu0 %v60
    %v659 = vpop.f32.mrb[0].mxu0
    %v660 = vadd.f32 0.0, %v659
    %v661 = vpop.f32.mrb[0].mxu0
    %662 = vmatprep.mubr.f32.mxu0 0.0
    %663 = vmatmul.mubr.f32.gmra.mrb[0].mxu0 %v63
    %v664 = vpop.f32.mrb[0].mxu0
    %v665 = vadd.f32 0.0, %v664
    %v666 = vpop.f32.mrb[0].mxu0
    %667 = vmatprep.mubr.f32.mxu0 0.0
    %668 = vmatmul.mubr.f32.gmra.mrb[0].mxu0 %v66
    %v669 = vpop.f32.mrb[0].mxu0
    %v670 = vadd.f32 0.0, %v669
    %v671 = vpop.f32.mrb[0].mxu0
    %672 = vmatprep.mubr.f32.mxu0 0.0
    %673 = vmatmul.mubr.f32.gmra.mrb[0].mxu0 %v69
    %v674 = vpop.f32.mrb[0].mxu0
    %v675 = vadd.f32 0.0, %v674
    %v676 = vpop.f32.mrb[0].mxu0
    %677 = vmatprep.mubr.f32.mxu0 0.0
    %678 = vmatmul.mubr.f32.gmra.mrb[0].mxu0 %v72
    %v679 = vpop.f32.mrb[0].mxu0
    %v680 = vadd.f32 0.0, %v679
    %v681 = vpop.f32.mrb[0].mxu0
    %682 = vmatprep.mubr.f32.mxu0 0.0
    %683 = vmatmul.mubr.f32.gmra.mrb[0].mxu0 %v75
    %v684 = vpop.f32.mrb[0].mxu0
    %v685 = vadd.f32 0.0, %v684
    %v686 = vpop.f32.mrb[0].mxu0
    %687 = vmatprep.mubr.f32.mxu0 0.0
    %688 = vmatmul.mubr.f32.gmra.mrb[0].mxu0 %v78
    %v689 = vpop.f32.mrb[0].mxu0
    %v690 = vadd.f32 0.0, %v689
    %v691 = vpop.f32.mrb[0].mxu0
    %692 = vdwg.mxu0
    %v693 = vmul.f32 %v655, %v42
    %v694 = vmul.f32 %v660, %v43
    %v695 = vmul.f32 %v665, %v45
    %v696 = vmul.f32 %v670, %v46
    %v697 = vadd.f32 %v693, %v695
    %v698 = vadd.f32 %v694, %v696
    %v699 = vmul.f32 %v675, %v48
    %v700 = vmul.f32 %v680, %v49
    %v701 = vadd.f32 %v697, %v699
    %v702 = vadd.f32 %v698, %v700
    %v703 = vmul.f32 %v685, %v51
    %v704 = vmul.f32 %v690, %v52
    %v705 = vadd.f32 %v701, %v703
    %v706 = vadd.f32 %v702, %v704
    %v707 = vadd.f32 %v705, %v32
    %v708 = vadd.f32 %v706, %v33
    %s709 = scalar_lea.vmem [#allocation5], 64
    %710 = vst.msk [vmem:[%s709] sm:$0xff] %vm201, %v707
    %711 = vst.msk [vmem:[%s709 + $0x8] sm:$0xff] %vm201, %v708
    %s712 = scalar_lea.vmem [#allocation2], 80
    %v713 = vld [vmem:[%s712] sm:$0xff]
    %v714 = vld [vmem:[%s712 + $0x8] sm:$0xff]
    %715 = vmatprep.subr.mxu0 0.0
    %716 = vmatpush1.msra.mxu0 %v713
    %717 = vmatprep.subr.mxu0 0.0
    %718 = vmatpush1.msra.mxu0 %v714
    %719 = vmatprep.subr.mxu0 0.0
    %720 = vmatpush1.msra.mxu0 0.0
    %721 = vmatprep.subr.mxu0 0.0
    %722 = vmatpush1.msra.mxu0 0.0
    %723 = vmatprep.subr.mxu0 0.0
    %724 = vmatpush1.msra.mxu0 0.0
    %725 = vmatprep.subr.mxu0 0.0
    %726 = vmatpush1.msra.mxu0 0.0
    %727 = vmatprep.subr.mxu0 0.0
    %728 = vmatpush1.msra.mxu0 0.0
    %729 = vmatprep.subr.mxu0 0.0
    %730 = vmatpush1.msra.mxu0 0.0
    %731 = vmatprep.subr.mxu0 0.0
    %732 = vmatpush1.msra.mxu0 0.0
    %733 = vmatprep.subr.mxu0 0.0
    %734 = vmatpush1.msra.mxu0 0.0
    %735 = vmatprep.subr.mxu0 0.0
    %736 = vmatpush1.msra.mxu0 0.0
    %737 = vmatprep.subr.mxu0 0.0
    %738 = vmatpush1.msra.mxu0 0.0
    %739 = vmatprep.subr.mxu0 0.0
    %740 = vmatpush1.msra.mxu0 0.0
    %741 = vmatprep.subr.mxu0 0.0
    %742 = vmatpush1.msra.mxu0 0.0
    %743 = vmatprep.subr.mxu0 0.0
    %744 = vmatpush1.msra.mxu0 0.0
    %745 = vmatprep.subr.mxu0 0.0
    %746 = vmatpush1.msra.mxu0 0.0
    %747 = vmatprep.subr.mxu0 0.0
    %748 = vmatpush1.msra.mxu0 0.0
    %749 = vmatprep.subr.mxu0 0.0
    %750 = vmatpush1.msra.mxu0 0.0
    %751 = vmatprep.subr.mxu0 0.0
    %752 = vmatpush1.msra.mxu0 0.0
    %753 = vmatprep.subr.mxu0 0.0
    %754 = vmatpush1.msra.mxu0 0.0
    %755 = vmatprep.subr.mxu0 0.0
    %756 = vmatpush1.msra.mxu0 0.0
    %757 = vmatprep.subr.mxu0 0.0
    %758 = vmatpush1.msra.mxu0 0.0
    %759 = vmatprep.subr.mxu0 0.0
    %760 = vmatpush1.msra.mxu0 0.0
    %761 = vmatprep.subr.mxu0 0.0
    %762 = vmatpush1.msra.mxu0 0.0
    %763 = vmatprep.subr.mxu0 0.0
    %764 = vmatpush1.msra.mxu0 0.0
    %765 = vmatprep.subr.mxu0 0.0
    %766 = vmatpush1.msra.mxu0 0.0
    %767 = vmatprep.subr.mxu0 0.0
    %768 = vmatpush1.msra.mxu0 0.0
    %769 = vmatprep.subr.mxu0 0.0
    %770 = vmatpush1.msra.mxu0 0.0
    %771 = vmatprep.subr.mxu0 0.0
    %772 = vmatpush1.msra.mxu0 0.0
    %773 = vmatprep.subr.mxu0 0.0
    %774 = vmatpush1.msra.mxu0 0.0
    %775 = vmatprep.subr.mxu0 0.0
    %776 = vmatpush1.msra.mxu0 0.0
    %777 = vmatprep.subr.mxu0 0.0
    %778 = vmatpush1.msra.mxu0 0.0
    %779 = vmatprep.mubr.f32.mxu0 0.0
    %780 = vmatmul.mubr.f32.gmra.mrb[0].mxu0 %v57
    %v781 = vpop.f32.mrb[0].mxu0
    %v782 = vadd.f32 0.0, %v781
    %v783 = vpop.f32.mrb[0].mxu0
    %784 = vmatprep.mubr.f32.mxu0 0.0
    %785 = vmatmul.mubr.f32.gmra.mrb[0].mxu0 %v60
    %v786 = vpop.f32.mrb[0].mxu0
    %v787 = vadd.f32 0.0, %v786
    %v788 = vpop.f32.mrb[0].mxu0
    %789 = vmatprep.mubr.f32.mxu0 0.0
    %790 = vmatmul.mubr.f32.gmra.mrb[0].mxu0 %v63
    %v791 = vpop.f32.mrb[0].mxu0
    %v792 = vadd.f32 0.0, %v791
    %v793 = vpop.f32.mrb[0].mxu0
    %794 = vmatprep.mubr.f32.mxu0 0.0
    %795 = vmatmul.mubr.f32.gmra.mrb[0].mxu0 %v66
    %v796 = vpop.f32.mrb[0].mxu0
    %v797 = vadd.f32 0.0, %v796
    %v798 = vpop.f32.mrb[0].mxu0
    %799 = vmatprep.mubr.f32.mxu0 0.0
    %800 = vmatmul.mubr.f32.gmra.mrb[0].mxu0 %v69
    %v801 = vpop.f32.mrb[0].mxu0
    %v802 = vadd.f32 0.0, %v801
    %v803 = vpop.f32.mrb[0].mxu0
    %804 = vmatprep.mubr.f32.mxu0 0.0
    %805 = vmatmul.mubr.f32.gmra.mrb[0].mxu0 %v72
    %v806 = vpop.f32.mrb[0].mxu0
    %v807 = vadd.f32 0.0, %v806
    %v808 = vpop.f32.mrb[0].mxu0
    %809 = vmatprep.mubr.f32.mxu0 0.0
    %810 = vmatmul.mubr.f32.gmra.mrb[0].mxu0 %v75
    %v811 = vpop.f32.mrb[0].mxu0
    %v812 = vadd.f32 0.0, %v811
    %v813 = vpop.f32.mrb[0].mxu0
    %814 = vmatprep.mubr.f32.mxu0 0.0
    %815 = vmatmul.mubr.f32.gmra.mrb[0].mxu0 %v78
    %v816 = vpop.f32.mrb[0].mxu0
    %v817 = vadd.f32 0.0, %v816
    %v818 = vpop.f32.mrb[0].mxu0
    %819 = vdwg.mxu0
    %v820 = vmul.f32 %v782, %v42
    %v821 = vmul.f32 %v787, %v43
    %v822 = vmul.f32 %v792, %v45
    %v823 = vmul.f32 %v797, %v46
    %v824 = vadd.f32 %v820, %v822
    %v825 = vadd.f32 %v821, %v823
    %v826 = vmul.f32 %v802, %v48
    %v827 = vmul.f32 %v807, %v49
    %v828 = vadd.f32 %v824, %v826
    %v829 = vadd.f32 %v825, %v827
    %v830 = vmul.f32 %v812, %v51
    %v831 = vmul.f32 %v817, %v52
    %v832 = vadd.f32 %v828, %v830
    %v833 = vadd.f32 %v829, %v831
    %v834 = vadd.f32 %v832, %v32
    %v835 = vadd.f32 %v833, %v33
    %s836 = scalar_lea.vmem [#allocation5], 80
    %837 = vst.msk [vmem:[%s836] sm:$0xff] %vm201, %v834
    %838 = vst.msk [vmem:[%s836 + $0x8] sm:$0xff] %vm201, %v835
    %s839 = scalar_lea.vmem [#allocation2], 96
    %v840 = vld [vmem:[%s839] sm:$0xff]
    %v841 = vld [vmem:[%s839 + $0x8] sm:$0xff]
    %842 = vmatprep.subr.mxu0 0.0
    %843 = vmatpush1.msra.mxu0 %v840
    %844 = vmatprep.subr.mxu0 0.0
    %845 = vmatpush1.msra.mxu0 %v841
    %846 = vmatprep.subr.mxu0 0.0
    %847 = vmatpush1.msra.mxu0 0.0
    %848 = vmatprep.subr.mxu0 0.0
    %849 = vmatpush1.msra.mxu0 0.0
    %850 = vmatprep.subr.mxu0 0.0
    %851 = vmatpush1.msra.mxu0 0.0
    %852 = vmatprep.subr.mxu0 0.0
    %853 = vmatpush1.msra.mxu0 0.0
    %854 = vmatprep.subr.mxu0 0.0
    %855 = vmatpush1.msra.mxu0 0.0
    %856 = vmatprep.subr.mxu0 0.0
    %857 = vmatpush1.msra.mxu0 0.0
    %858 = vmatprep.subr.mxu0 0.0
    %859 = vmatpush1.msra.mxu0 0.0
    %860 = vmatprep.subr.mxu0 0.0
    %861 = vmatpush1.msra.mxu0 0.0
    %862 = vmatprep.subr.mxu0 0.0
    %863 = vmatpush1.msra.mxu0 0.0
    %864 = vmatprep.subr.mxu0 0.0
    %865 = vmatpush1.msra.mxu0 0.0
    %866 = vmatprep.subr.mxu0 0.0
    %867 = vmatpush1.msra.mxu0 0.0
    %868 = vmatprep.subr.mxu0 0.0
    %869 = vmatpush1.msra.mxu0 0.0
    %870 = vmatprep.subr.mxu0 0.0
    %871 = vmatpush1.msra.mxu0 0.0
    %872 = vmatprep.subr.mxu0 0.0
    %873 = vmatpush1.msra.mxu0 0.0
    %874 = vmatprep.subr.mxu0 0.0
    %875 = vmatpush1.msra.mxu0 0.0
    %876 = vmatprep.subr.mxu0 0.0
    %877 = vmatpush1.msra.mxu0 0.0
    %878 = vmatprep.subr.mxu0 0.0
    %879 = vmatpush1.msra.mxu0 0.0
    %880 = vmatprep.subr.mxu0 0.0
    %881 = vmatpush1.msra.mxu0 0.0
    %882 = vmatprep.subr.mxu0 0.0
    %883 = vmatpush1.msra.mxu0 0.0
    %884 = vmatprep.subr.mxu0 0.0
    %885 = vmatpush1.msra.mxu0 0.0
    %886 = vmatprep.subr.mxu0 0.0
    %887 = vmatpush1.msra.mxu0 0.0
    %888 = vmatprep.subr.mxu0 0.0
    %889 = vmatpush1.msra.mxu0 0.0
    %890 = vmatprep.subr.mxu0 0.0
    %891 = vmatpush1.msra.mxu0 0.0
    %892 = vmatprep.subr.mxu0 0.0
    %893 = vmatpush1.msra.mxu0 0.0
    %894 = vmatprep.subr.mxu0 0.0
    %895 = vmatpush1.msra.mxu0 0.0
    %896 = vmatprep.subr.mxu0 0.0
    %897 = vmatpush1.msra.mxu0 0.0
    %898 = vmatprep.subr.mxu0 0.0
    %899 = vmatpush1.msra.mxu0 0.0
    %900 = vmatprep.subr.mxu0 0.0
    %901 = vmatpush1.msra.mxu0 0.0
    %902 = vmatprep.subr.mxu0 0.0
    %903 = vmatpush1.msra.mxu0 0.0
    %904 = vmatprep.subr.mxu0 0.0
    %905 = vmatpush1.msra.mxu0 0.0
    %906 = vmatprep.mubr.f32.mxu0 0.0
    %907 = vmatmul.mubr.f32.gmra.mrb[0].mxu0 %v57
    %v908 = vpop.f32.mrb[0].mxu0
    %v909 = vadd.f32 0.0, %v908
    %v910 = vpop.f32.mrb[0].mxu0
    %911 = vmatprep.mubr.f32.mxu0 0.0
    %912 = vmatmul.mubr.f32.gmra.mrb[0].mxu0 %v60
    %v913 = vpop.f32.mrb[0].mxu0
    %v914 = vadd.f32 0.0, %v913
    %v915 = vpop.f32.mrb[0].mxu0
    %916 = vmatprep.mubr.f32.mxu0 0.0
    %917 = vmatmul.mubr.f32.gmra.mrb[0].mxu0 %v63
    %v918 = vpop.f32.mrb[0].mxu0
    %v919 = vadd.f32 0.0, %v918
    %v920 = vpop.f32.mrb[0].mxu0
    %921 = vmatprep.mubr.f32.mxu0 0.0
    %922 = vmatmul.mubr.f32.gmra.mrb[0].mxu0 %v66
    %v923 = vpop.f32.mrb[0].mxu0
    %v924 = vadd.f32 0.0, %v923
    %v925 = vpop.f32.mrb[0].mxu0
    %926 = vmatprep.mubr.f32.mxu0 0.0
    %927 = vmatmul.mubr.f32.gmra.mrb[0].mxu0 %v69
    %v928 = vpop.f32.mrb[0].mxu0
    %v929 = vadd.f32 0.0, %v928
    %v930 = vpop.f32.mrb[0].mxu0
    %931 = vmatprep.mubr.f32.mxu0 0.0
    %932 = vmatmul.mubr.f32.gmra.mrb[0].mxu0 %v72
    %v933 = vpop.f32.mrb[0].mxu0
    %v934 = vadd.f32 0.0, %v933
    %v935 = vpop.f32.mrb[0].mxu0
    %936 = vmatprep.mubr.f32.mxu0 0.0
    %937 = vmatmul.mubr.f32.gmra.mrb[0].mxu0 %v75
    %v938 = vpop.f32.mrb[0].mxu0
    %v939 = vadd.f32 0.0, %v938
    %v940 = vpop.f32.mrb[0].mxu0
    %941 = vmatprep.mubr.f32.mxu0 0.0
    %942 = vmatmul.mubr.f32.gmra.mrb[0].mxu0 %v78
    %v943 = vpop.f32.mrb[0].mxu0
    %v944 = vadd.f32 0.0, %v943
    %v945 = vpop.f32.mrb[0].mxu0
    %946 = vdwg.mxu0
    %v947 = vmul.f32 %v909, %v42
    %v948 = vmul.f32 %v914, %v43
    %v949 = vmul.f32 %v919, %v45
    %v950 = vmul.f32 %v924, %v46
    %v951 = vadd.f32 %v947, %v949
    %v952 = vadd.f32 %v948, %v950
    %v953 = vmul.f32 %v929, %v48
    %v954 = vmul.f32 %v934, %v49
    %v955 = vadd.f32 %v951, %v953
    %v956 = vadd.f32 %v952, %v954
    %v957 = vmul.f32 %v939, %v51
    %v958 = vmul.f32 %v944, %v52
    %v959 = vadd.f32 %v955, %v957
    %v960 = vadd.f32 %v956, %v958
    %v961 = vadd.f32 %v959, %v32
    %v962 = vadd.f32 %v960, %v33
    %s963 = scalar_lea.vmem [#allocation5], 96
    %964 = vst.msk [vmem:[%s963] sm:$0xff] %vm201, %v961
    %965 = vst.msk [vmem:[%s963 + $0x8] sm:$0xff] %vm201, %v962
    %s966 = scalar_lea.vmem [#allocation2], 112
    %v967 = vld [vmem:[%s966] sm:$0xff]
    %v968 = vld [vmem:[%s966 + $0x8] sm:$0xff]
    %969 = vmatprep.subr.mxu0 0.0
    %970 = vmatpush1.msra.mxu0 %v967
    %971 = vmatprep.subr.mxu0 0.0
    %972 = vmatpush1.msra.mxu0 %v968
    %973 = vmatprep.subr.mxu0 0.0
    %974 = vmatpush1.msra.mxu0 0.0
    %975 = vmatprep.subr.mxu0 0.0
    %976 = vmatpush1.msra.mxu0 0.0
    %977 = vmatprep.subr.mxu0 0.0
    %978 = vmatpush1.msra.mxu0 0.0
    %979 = vmatprep.subr.mxu0 0.0
    %980 = vmatpush1.msra.mxu0 0.0
    %981 = vmatprep.subr.mxu0 0.0
    %982 = vmatpush1.msra.mxu0 0.0
    %983 = vmatprep.subr.mxu0 0.0
    %984 = vmatpush1.msra.mxu0 0.0
    %985 = vmatprep.subr.mxu0 0.0
    %986 = vmatpush1.msra.mxu0 0.0
    %987 = vmatprep.subr.mxu0 0.0
    %988 = vmatpush1.msra.mxu0 0.0
    %989 = vmatprep.subr.mxu0 0.0
    %990 = vmatpush1.msra.mxu0 0.0
    %991 = vmatprep.subr.mxu0 0.0
    %992 = vmatpush1.msra.mxu0 0.0
    %993 = vmatprep.subr.mxu0 0.0
    %994 = vmatpush1.msra.mxu0 0.0
    %995 = vmatprep.subr.mxu0 0.0
    %996 = vmatpush1.msra.mxu0 0.0
    %997 = vmatprep.subr.mxu0 0.0
    %998 = vmatpush1.msra.mxu0 0.0
    %999 = vmatprep.subr.mxu0 0.0
    %1000 = vmatpush1.msra.mxu0 0.0
    %1001 = vmatprep.subr.mxu0 0.0
    %1002 = vmatpush1.msra.mxu0 0.0
    %1003 = vmatprep.subr.mxu0 0.0
    %1004 = vmatpush1.msra.mxu0 0.0
    %1005 = vmatprep.subr.mxu0 0.0
    %1006 = vmatpush1.msra.mxu0 0.0
    %1007 = vmatprep.subr.mxu0 0.0
    %1008 = vmatpush1.msra.mxu0 0.0
    %1009 = vmatprep.subr.mxu0 0.0
    %1010 = vmatpush1.msra.mxu0 0.0
    %1011 = vmatprep.subr.mxu0 0.0
    %1012 = vmatpush1.msra.mxu0 0.0
    %1013 = vmatprep.subr.mxu0 0.0
    %1014 = vmatpush1.msra.mxu0 0.0
    %1015 = vmatprep.subr.mxu0 0.0
    %1016 = vmatpush1.msra.mxu0 0.0
    %1017 = vmatprep.subr.mxu0 0.0
    %1018 = vmatpush1.msra.mxu0 0.0
    %1019 = vmatprep.subr.mxu0 0.0
    %1020 = vmatpush1.msra.mxu0 0.0
    %1021 = vmatprep.subr.mxu0 0.0
    %1022 = vmatpush1.msra.mxu0 0.0
    %1023 = vmatprep.subr.mxu0 0.0
    %1024 = vmatpush1.msra.mxu0 0.0
    %1025 = vmatprep.subr.mxu0 0.0
    %1026 = vmatpush1.msra.mxu0 0.0
    %1027 = vmatprep.subr.mxu0 0.0
    %1028 = vmatpush1.msra.mxu0 0.0
    %1029 = vmatprep.subr.mxu0 0.0
    %1030 = vmatpush1.msra.mxu0 0.0
    %1031 = vmatprep.subr.mxu0 0.0
    %1032 = vmatpush1.msra.mxu0 0.0
    %1033 = vmatprep.mubr.f32.mxu0 0.0
    %1034 = vmatmul.mubr.f32.gmra.mrb[0].mxu0 %v57
    %v1035 = vpop.f32.mrb[0].mxu0
    %v1036 = vadd.f32 0.0, %v1035
    %v1037 = vpop.f32.mrb[0].mxu0
    %1038 = vmatprep.mubr.f32.mxu0 0.0
    %1039 = vmatmul.mubr.f32.gmra.mrb[0].mxu0 %v60
    %v1040 = vpop.f32.mrb[0].mxu0
    %v1041 = vadd.f32 0.0, %v1040
    %v1042 = vpop.f32.mrb[0].mxu0
    %1043 = vmatprep.mubr.f32.mxu0 0.0
    %1044 = vmatmul.mubr.f32.gmra.mrb[0].mxu0 %v63
    %v1045 = vpop.f32.mrb[0].mxu0
    %v1046 = vadd.f32 0.0, %v1045
    %v1047 = vpop.f32.mrb[0].mxu0
    %1048 = vmatprep.mubr.f32.mxu0 0.0
    %1049 = vmatmul.mubr.f32.gmra.mrb[0].mxu0 %v66
    %v1050 = vpop.f32.mrb[0].mxu0
    %v1051 = vadd.f32 0.0, %v1050
    %v1052 = vpop.f32.mrb[0].mxu0
    %1053 = vmatprep.mubr.f32.mxu0 0.0
    %1054 = vmatmul.mubr.f32.gmra.mrb[0].mxu0 %v69
    %v1055 = vpop.f32.mrb[0].mxu0
    %v1056 = vadd.f32 0.0, %v1055
    %v1057 = vpop.f32.mrb[0].mxu0
    %1058 = vmatprep.mubr.f32.mxu0 0.0
    %1059 = vmatmul.mubr.f32.gmra.mrb[0].mxu0 %v72
    %v1060 = vpop.f32.mrb[0].mxu0
    %v1061 = vadd.f32 0.0, %v1060
    %v1062 = vpop.f32.mrb[0].mxu0
    %1063 = vmatprep.mubr.f32.mxu0 0.0
    %1064 = vmatmul.mubr.f32.gmra.mrb[0].mxu0 %v75
    %v1065 = vpop.f32.mrb[0].mxu0
    %v1066 = vadd.f32 0.0, %v1065
    %v1067 = vpop.f32.mrb[0].mxu0
    %1068 = vmatprep.mubr.f32.mxu0 0.0
    %1069 = vmatmul.mubr.f32.gmra.mrb[0].mxu0 %v78
    %v1070 = vpop.f32.mrb[0].mxu0
    %v1071 = vadd.f32 0.0, %v1070
    %v1072 = vpop.f32.mrb[0].mxu0
    %1073 = vdwg.mxu0
    %v1074 = vmul.f32 %v1036, %v42
    %v1075 = vmul.f32 %v1041, %v43
    %v1076 = vmul.f32 %v1046, %v45
    %v1077 = vmul.f32 %v1051, %v46
    %v1078 = vadd.f32 %v1074, %v1076
    %v1079 = vadd.f32 %v1075, %v1077
    %v1080 = vmul.f32 %v1056, %v48
    %v1081 = vmul.f32 %v1061, %v49
    %v1082 = vadd.f32 %v1078, %v1080
    %v1083 = vadd.f32 %v1079, %v1081
    %v1084 = vmul.f32 %v1066, %v51
    %v1085 = vmul.f32 %v1071, %v52
    %v1086 = vadd.f32 %v1082, %v1084
    %v1087 = vadd.f32 %v1083, %v1085
    %v1088 = vadd.f32 %v1086, %v32
    %v1089 = vadd.f32 %v1087, %v33
    %s1090 = scalar_lea.vmem [#allocation5], 112
    %1091 = vst.msk [vmem:[%s1090] sm:$0xff] %vm201, %v1088
    %1092 = vst.msk [vmem:[%s1090 + $0x8] sm:$0xff] %vm201, %v1089
    // Predicated region
    $region22: #{tpu_custom_call.1} parent=1 // pred_check
      _
    $region23: #{tpu_custom_call.1} parent=1 // pred_check_branch
      %1094 = sbr.rel (0) target = $region25
    $region24: #{tpu_custom_call.1} parent=1 // pred_region
      %s1096 = ssub.s32 2048, 2048
      %1097 = vsyncadd [#allocation4], %s1096
      %s1098 = sshll.u32 [#allocation5], 4
      %s1099 = int_to_ptr.vmem [resolvable:$true] %s1098
      %1104 = dma.vmem_to_hbm [thread:$0]  %s1099, 2048, %s4, [#allocation4], 128, 128, 8
    $region25: #{tpu_custom_call.1} parent=1 // pred_fallthru
      _
    // Predicated region
    $region26: #{tpu_custom_call.1} parent=1 // pred_check
      _
    $region27: #{tpu_custom_call.1} parent=1 // pred_check_branch
      %1106 = sbr.rel (0) target = $region29
    $region28: #{tpu_custom_call.1} parent=1 // pred_region
      %1107 = dma.done [#allocation4], 2048
    $region29: #{tpu_custom_call.1} parent=1 // pred_fallthru
      _
    %1108 = vsyncpa [#allocation3], 1
    %1109 = vsyncpa [#allocation4], 1

</llo_original>
